<compile_context>
chip_gen: v7x
topology: tpu7x:2x2x1
jax: 0.10.0
libtpu: 0.0.40
codegen_flags: <defaults>
</compile_context>

<pallas_src>
import jax
import jax.numpy as jnp
from jax import lax
from jax.experimental import pallas as pl
from jax.experimental.pallas import tpu as pltpu


def _round_up(a, b):
    return -(-a // b) * b


def _vmem_capacity():
    try:
        return int(pltpu.get_tpu_info().vmem_capacity_bytes)
    except Exception:
        return 64 << 20  # conservative default (v7x per-TensorCore)


def _pick_num_chunks(tm, ip, budget=8 << 20):
    """Split the intermediate dim into 128-lane-multiple chunks so the f32
    g/u/act intermediates stay under `budget` bytes."""
    lanes = max(1, ip // 128)
    nc = 1
    while nc < lanes and 3 * tm * (ip // nc) * 4 > budget:
        nc += 1
        while lanes % nc and nc < lanes:
            nc += 1
    return nc


def _vmem_need(tm, h, ip, num_chunks, w_bytes, out_itemsize):
    ci = ip // num_chunks
    return (2 * w_bytes                   # weights (2x: safe even if Buffered(1) is ignored)
            + 2 * tm * h * 2              # double-buffered bf16 input tiles
            + 2 * tm * h * out_itemsize   # double-buffered output tiles
            + 3 * tm * ci * 4             # per-chunk g / u / act f32 intermediates
            + tm * h * (2 + 4))           # bf16 carry + f32 accumulator


def _pick_tile_cap(vmem_cap, w_bytes, h, ip, out_itemsize):
    for cap in (512, 256, 128, 64, 32, 16, 8):
        nc = _pick_num_chunks(cap, ip)
        if _vmem_need(cap, h, ip, nc, w_bytes, out_itemsize) <= int(vmem_cap * 0.75):
            return cap
    return 8


def _pick_tile(t, cap):
    """Token-tile size (multiple of 8 sublanes) and tile count.  Produces >= 2
    tiles whenever possible (v7x megacore) and derives the tile from T so an
    awkward T does not pad a whole extra tile."""
    tp8 = _round_up(max(t, 1), 8)
    if tp8 <= 8:
        return 8, 1
    n = max(2, -(-tp8 // cap))
    tm = _round_up(-(-tp8 // n), 8)
    return tm, -(-tp8 // tm)


def _make_kernel(E, Ip, num_chunks, unroll):
    CI = Ip // num_chunks

    def kernel(x_ref, gu_ref, down_ref, o_ref):
        # x_ref:    (TM, H)       bf16 activation tile
        # gu_ref:   (E, H, 2*Ip)  bf16 fused gate|up weights (VMEM resident)
        # down_ref: (E, Ip, H)    bf16 down weights          (VMEM resident)
        # o_ref:    (TM, H)       output tile (input dtype)

        def expert(e, h):
            """One SwiGLU MLP: h (TM, H) bf16 -> (TM, H) f32."""
            if num_chunks == 1:
                gu = jnp.dot(h, gu_ref[e], preferred_element_type=jnp.float32)
                g = gu[:, :Ip]                 # lane-aligned split (Ip % 128 == 0)
                u = gu[:, Ip:]
                act = (g * pl.reciprocal(1.0 + jnp.exp(-g), approx=True)) * u
                return jnp.dot(act.astype(jnp.bfloat16), down_ref[e],
                               preferred_element_type=jnp.float32)
            # Production-shape path: chunk the intermediate dim so the f32
            # intermediates stay bounded; accumulate the down projection.
            gu_e = gu_ref.at[e]
            dn_e = down_ref.at[e]
            acc = jnp.zeros((h.shape[0], o_ref.shape[1]), jnp.float32)
            for c in range(num_chunks):        # static chunk loop
                off = c * CI
                g = jnp.dot(h, gu_e[:, off:off + CI],
                            preferred_element_type=jnp.float32)
                u = jnp.dot(h, gu_e[:, Ip + off:Ip + off + CI],
                            preferred_element_type=jnp.float32)
                act = (g * pl.reciprocal(1.0 + jnp.exp(-g), approx=True)) * u
                acc = acc + jnp.dot(act.astype(jnp.bfloat16), dn_e[off:off + CI, :],
                                    preferred_element_type=jnp.float32)
            return acc

        h = x_ref[...].astype(jnp.bfloat16)    # bf16 carry between experts
        if E > 1:
            h = lax.fori_loop(0, E - 1,
                              lambda e, hc: expert(e, hc).astype(jnp.bfloat16),
                              h, unroll=unroll)
        # Final expert writes f32 directly (no extra carry round-trip).
        # TODO(synk): for H < 128 this is a masked vst.msk partial store; fine
        # at toy shapes, fold tokens into lanes for a lane-dense store if it
        # ever matters.
        o_ref[...] = expert(E - 1, h).astype(o_ref.dtype)

    return kernel


def multi_mlp_forward(x, gate_w, up_w, down_w):
    """x: (B, S, H).  gate_w/up_w: (E, H, I); down_w: (E, I, H)  (x @ W layout)."""
    B, S, H = x.shape
    E, _, I = gate_w.shape
    T = B * S
    Ip = _round_up(I, 128)                      # lane-align the gate/up split
    pad_i = Ip - I

    # Weight packing: pad I to a 128-lane multiple, fuse gate|up, cast bf16.
    gu_w = jnp.concatenate(
        [jnp.pad(gate_w, ((0, 0), (0, 0), (0, pad_i))),
         jnp.pad(up_w, ((0, 0), (0, 0), (0, pad_i)))],
        axis=-1).astype(jnp.bfloat16)                                        # (E, H, 2*Ip)
    dn_w = jnp.pad(down_w, ((0, 0), (0, pad_i), (0, 0))).astype(jnp.bfloat16)  # (E, Ip, H)

    # Tiling derived from this generation's actual VMEM capacity.
    vmem_cap = _vmem_capacity()
    w_bytes = (gu_w.size + dn_w.size) * 2
    out_itemsize = x.dtype.itemsize
    cap = _pick_tile_cap(vmem_cap, w_bytes, H, Ip, out_itemsize)
    TM, num_tiles = _pick_tile(T, cap)
    Tp = TM * num_tiles

    x2 = x.reshape(T, H)
    if Tp != T:
        x2 = jnp.pad(x2, ((0, Tp - T), (0, 0)))
    x2 = x2.astype(jnp.bfloat16)     # halve activation DMA; the MXU consumes bf16 anyway

    num_chunks = _pick_num_chunks(TM, Ip)
    unroll = E <= 8                  # full unroll only for short expert chains
    kernel = _make_kernel(E, Ip, num_chunks, unroll)

    need = _vmem_need(TM, H, Ip, num_chunks, w_bytes, out_itemsize)
    vmem_limit = int(min(vmem_cap, max(32 << 20, need + (16 << 20))))

    def run(single_buffer_weights):
        w_kw = dict(pipeline_mode=pl.Buffered(1)) if single_buffer_weights else {}
        grid_spec = pltpu.PrefetchScalarGridSpec(
            num_scalar_prefetch=0,
            grid=(num_tiles,),
            in_specs=[
                pl.BlockSpec((TM, H), lambda t: (t, 0)),                    # activation tile
                pl.BlockSpec((E, H, 2 * Ip), lambda t: (0, 0, 0), **w_kw),  # fused gate|up
                pl.BlockSpec((E, Ip, H), lambda t: (0, 0, 0), **w_kw),      # down weights
            ],
            out_specs=pl.BlockSpec((TM, H), lambda t: (t, 0)),
        )
        call = pl.pallas_call(
            kernel,
            out_shape=jax.ShapeDtypeStruct((Tp, H), x.dtype),
            grid_spec=grid_spec,
            compiler_params=pltpu.CompilerParams(
                dimension_semantics=("parallel",),   # token tiles are independent
                vmem_limit_bytes=vmem_limit,
            ),
        )
        return jax.jit(call)(x2, gu_w, dn_w)

    try:
        out2 = run(True)             # weights single-buffered (resident) in VMEM
    except Exception:
        out2 = run(False)            # fallback if pipeline_mode/Buffered(1) unsupported

    return out2[:T].reshape(B, S, H)


def _reference(x, gate_w, up_w, down_w):
    """Pure-JAX reference mirroring the kernel numerics (bf16 operands/carry,
    f32 accumulation, SiLU in f32)."""
    E, H, _ = gate_w.shape
    h = x.reshape(-1, H).astype(jnp.bfloat16)
    for e in range(E):
        g = jnp.dot(h, gate_w[e].astype(jnp.bfloat16), preferred_element_type=jnp.float32)
        u = jnp.dot(h, up_w[e].astype(jnp.bfloat16), preferred_element_type=jnp.float32)
        act = (g * jax.nn.sigmoid(g)) * u
        h32 = jnp.dot(act.astype(jnp.bfloat16), down_w[e].astype(jnp.bfloat16),
                      preferred_element_type=jnp.float32)
        h = h32.astype(jnp.bfloat16) if e < E - 1 else h32
    return h.reshape(x.shape).astype(x.dtype)


if __name__ == "__main__":
    # Config (small, consistent with the module's forward; mlp_bias=False):
    batch, seq = 2, 8
    hidden_size = 32
    intermediate_size = 64
    expert_num = 3

    key = jax.random.PRNGKey(0)
    kx, kg, ku, kd = jax.random.split(key, 4)

    x = jax.random.normal(kx, (batch, seq, hidden_size), dtype=jnp.float32)

    # PyTorch nn.Linear stores (out, in); generate in that convention, then
    # transpose to (in, out) for the x @ W layout the kernel uses.
    scale_hi = 1.0 / jnp.sqrt(hidden_size)
    scale_ih = 1.0 / jnp.sqrt(intermediate_size)
    gate_w_oi = jax.random.uniform(
        kg, (expert_num, intermediate_size, hidden_size),
        minval=-scale_hi, maxval=scale_hi, dtype=jnp.float32)
    up_w_oi = jax.random.uniform(
        ku, (expert_num, intermediate_size, hidden_size),
        minval=-scale_hi, maxval=scale_hi, dtype=jnp.float32)
    down_w_oi = jax.random.uniform(
        kd, (expert_num, hidden_size, intermediate_size),
        minval=-scale_ih, maxval=scale_ih, dtype=jnp.float32)

    gate_w = jnp.transpose(gate_w_oi, (0, 2, 1))    # (E, H, I)
    up_w = jnp.transpose(up_w_oi, (0, 2, 1))        # (E, H, I)
    down_w = jnp.transpose(down_w_oi, (0, 2, 1))    # (E, I, H)

    out = multi_mlp_forward(x, gate_w, up_w, down_w)
    out = jax.block_until_ready(out)

    ref = _reference(x, gate_w, up_w, down_w)
    assert out.shape == x.shape and out.dtype == x.dtype
    assert jnp.allclose(out, ref, atol=5e-2, rtol=5e-2), "mismatch vs JAX reference"

    print("KERNEL_OK")
</pallas_src>

<mosaic_0001>
module attributes {stable_mosaic.version = 11 : i64} {
  func.func @kernel(%arg0: i32, %arg1: memref<8x32xbf16, #tpu.memory_space<vmem>>, %arg2: memref<3x32x256xbf16, #tpu.memory_space<vmem>>, %arg3: memref<3x128x32xbf16, #tpu.memory_space<vmem>>, %arg4: memref<8x32xf32, #tpu.memory_space<vmem>>) attributes {dimension_semantics = [#tpu.dimension_semantics<parallel>], iteration_bounds = array<i64: 2>, scalar_prefetch = 0 : i64, scratch_operands = 0 : i64, tpu.core_type = #tpu.core_type<tc>, window_params = [{transform_indices = @transform_0, window_bounds = array<i64: 8, 32>}, {pipeline_mode = #tpu.pipeline_mode<synchronous>, transform_indices = @transform_1, window_bounds = array<i64: 3, 32, 256>}, {pipeline_mode = #tpu.pipeline_mode<synchronous>, transform_indices = @transform_2, window_bounds = array<i64: 3, 128, 32>}, {transform_indices = @transform_3, window_bounds = array<i64: 8, 32>}]} {
    %c0 = arith.constant 0 : index
    %c0_0 = arith.constant 0 : index
    %0 = vector.load %arg1[%c0, %c0_0] : memref<8x32xbf16, #tpu.memory_space<vmem>>, vector<8x32xbf16>
    %c0_i32 = arith.constant 0 : i32
    %1 = arith.index_cast %c0_i32 : i32 to index
    %c0_1 = arith.constant 0 : index
    %c0_2 = arith.constant 0 : index
    %2 = vector.load %arg2[%1, %c0_1, %c0_2] : memref<3x32x256xbf16, #tpu.memory_space<vmem>>, vector<1x32x256xbf16>
    %3 = vector.shape_cast %2 : vector<1x32x256xbf16> to vector<32x256xbf16>
    %cst = arith.constant dense<0.000000e+00> : vector<8x256xf32>
    %4 = tpu.matmul %0, %3, %cst {dimension_numbers = #tpu.dot_dimension_numbers<[1], [0], [0], [1], [0, 0, 1, 1], [], []>} : vector<8x32xbf16>, vector<32x256xbf16>, vector<8x256xf32> -> vector<8x256xf32>
    %5 = vector.extract_strided_slice %4 {offsets = [0, 0], sizes = [8, 128], strides = [1, 1]} : vector<8x256xf32> to vector<8x128xf32>
    %6 = vector.extract_strided_slice %4 {offsets = [0, 128], sizes = [8, 128], strides = [1, 1]} : vector<8x256xf32> to vector<8x128xf32>
    %cst_3 = arith.constant 0.000000e+00 : f32
    %7 = vector.broadcast %cst_3 : f32 to vector<8x128xf32>
    %8 = arith.subf %7, %5 : vector<8x128xf32>
    %9 = math.exp %8 : vector<8x128xf32>
    %cst_4 = arith.constant 1.000000e+00 : f32
    %10 = vector.broadcast %cst_4 : f32 to vector<8x128xf32>
    %11 = arith.addf %10, %9 : vector<8x128xf32>
    %12 = tpu.reciprocal %11 {approx = true} : vector<8x128xf32> -> vector<8x128xf32>
    %13 = arith.mulf %5, %12 : vector<8x128xf32>
    %14 = arith.mulf %13, %6 : vector<8x128xf32>
    %15 = arith.truncf %14 : vector<8x128xf32> to vector<8x128xbf16>
    %16 = arith.index_cast %c0_i32 : i32 to index
    %c0_5 = arith.constant 0 : index
    %c0_6 = arith.constant 0 : index
    %17 = vector.load %arg3[%16, %c0_5, %c0_6] : memref<3x128x32xbf16, #tpu.memory_space<vmem>>, vector<1x128x32xbf16>
    %18 = vector.shape_cast %17 : vector<1x128x32xbf16> to vector<128x32xbf16>
    %cst_7 = arith.constant dense<0.000000e+00> : vector<8x32xf32>
    %19 = tpu.matmul %15, %18, %cst_7 {dimension_numbers = #tpu.dot_dimension_numbers<[1], [0], [0], [1], [0, 0, 1, 1], [], []>} : vector<8x128xbf16>, vector<128x32xbf16>, vector<8x32xf32> -> vector<8x32xf32>
    %20 = arith.truncf %19 : vector<8x32xf32> to vector<8x32xbf16>
    %c1_i32 = arith.constant 1 : i32
    %21 = arith.index_cast %c1_i32 : i32 to index
    %c0_8 = arith.constant 0 : index
    %c0_9 = arith.constant 0 : index
    %22 = vector.load %arg2[%21, %c0_8, %c0_9] : memref<3x32x256xbf16, #tpu.memory_space<vmem>>, vector<1x32x256xbf16>
    %23 = vector.shape_cast %22 : vector<1x32x256xbf16> to vector<32x256xbf16>
    %cst_10 = arith.constant dense<0.000000e+00> : vector<8x256xf32>
    %24 = tpu.matmul %20, %23, %cst_10 {dimension_numbers = #tpu.dot_dimension_numbers<[1], [0], [0], [1], [0, 0, 1, 1], [], []>} : vector<8x32xbf16>, vector<32x256xbf16>, vector<8x256xf32> -> vector<8x256xf32>
    %25 = vector.extract_strided_slice %24 {offsets = [0, 0], sizes = [8, 128], strides = [1, 1]} : vector<8x256xf32> to vector<8x128xf32>
    %26 = vector.extract_strided_slice %24 {offsets = [0, 128], sizes = [8, 128], strides = [1, 1]} : vector<8x256xf32> to vector<8x128xf32>
    %cst_11 = arith.constant 0.000000e+00 : f32
    %27 = vector.broadcast %cst_11 : f32 to vector<8x128xf32>
    %28 = arith.subf %27, %25 : vector<8x128xf32>
    %29 = math.exp %28 : vector<8x128xf32>
    %cst_12 = arith.constant 1.000000e+00 : f32
    %30 = vector.broadcast %cst_12 : f32 to vector<8x128xf32>
    %31 = arith.addf %30, %29 : vector<8x128xf32>
    %32 = tpu.reciprocal %31 {approx = true} : vector<8x128xf32> -> vector<8x128xf32>
    %33 = arith.mulf %25, %32 : vector<8x128xf32>
    %34 = arith.mulf %33, %26 : vector<8x128xf32>
    %35 = arith.truncf %34 : vector<8x128xf32> to vector<8x128xbf16>
    %36 = arith.index_cast %c1_i32 : i32 to index
    %c0_13 = arith.constant 0 : index
    %c0_14 = arith.constant 0 : index
    %37 = vector.load %arg3[%36, %c0_13, %c0_14] : memref<3x128x32xbf16, #tpu.memory_space<vmem>>, vector<1x128x32xbf16>
    %38 = vector.shape_cast %37 : vector<1x128x32xbf16> to vector<128x32xbf16>
    %cst_15 = arith.constant dense<0.000000e+00> : vector<8x32xf32>
    %39 = tpu.matmul %35, %38, %cst_15 {dimension_numbers = #tpu.dot_dimension_numbers<[1], [0], [0], [1], [0, 0, 1, 1], [], []>} : vector<8x128xbf16>, vector<128x32xbf16>, vector<8x32xf32> -> vector<8x32xf32>
    %40 = arith.truncf %39 : vector<8x32xf32> to vector<8x32xbf16>
    %c2_i32 = arith.constant 2 : i32
    %c2 = arith.constant 2 : index
    %c0_16 = arith.constant 0 : index
    %c0_17 = arith.constant 0 : index
    %41 = vector.load %arg2[%c2, %c0_16, %c0_17] : memref<3x32x256xbf16, #tpu.memory_space<vmem>>, vector<1x32x256xbf16>
    %42 = vector.shape_cast %41 : vector<1x32x256xbf16> to vector<32x256xbf16>
    %cst_18 = arith.constant dense<0.000000e+00> : vector<8x256xf32>
    %43 = tpu.matmul %40, %42, %cst_18 {dimension_numbers = #tpu.dot_dimension_numbers<[1], [0], [0], [1], [0, 0, 1, 1], [], []>} : vector<8x32xbf16>, vector<32x256xbf16>, vector<8x256xf32> -> vector<8x256xf32>
    %44 = vector.extract_strided_slice %43 {offsets = [0, 0], sizes = [8, 128], strides = [1, 1]} : vector<8x256xf32> to vector<8x128xf32>
    %45 = vector.extract_strided_slice %43 {offsets = [0, 128], sizes = [8, 128], strides = [1, 1]} : vector<8x256xf32> to vector<8x128xf32>
    %cst_19 = arith.constant 0.000000e+00 : f32
    %46 = vector.broadcast %cst_19 : f32 to vector<8x128xf32>
    %47 = arith.subf %46, %44 : vector<8x128xf32>
    %48 = math.exp %47 : vector<8x128xf32>
    %cst_20 = arith.constant 1.000000e+00 : f32
    %49 = vector.broadcast %cst_20 : f32 to vector<8x128xf32>
    %50 = arith.addf %49, %48 : vector<8x128xf32>
    %51 = tpu.reciprocal %50 {approx = true} : vector<8x128xf32> -> vector<8x128xf32>
    %52 = arith.mulf %44, %51 : vector<8x128xf32>
    %53 = arith.mulf %52, %45 : vector<8x128xf32>
    %54 = arith.truncf %53 : vector<8x128xf32> to vector<8x128xbf16>
    %c2_21 = arith.constant 2 : index
    %c0_22 = arith.constant 0 : index
    %c0_23 = arith.constant 0 : index
    %55 = vector.load %arg3[%c2_21, %c0_22, %c0_23] : memref<3x128x32xbf16, #tpu.memory_space<vmem>>, vector<1x128x32xbf16>
    %56 = vector.shape_cast %55 : vector<1x128x32xbf16> to vector<128x32xbf16>
    %cst_24 = arith.constant dense<0.000000e+00> : vector<8x32xf32>
    %57 = tpu.matmul %54, %56, %cst_24 {dimension_numbers = #tpu.dot_dimension_numbers<[1], [0], [0], [1], [0, 0, 1, 1], [], []>} : vector<8x128xbf16>, vector<128x32xbf16>, vector<8x32xf32> -> vector<8x32xf32>
    %c0_25 = arith.constant 0 : index
    %c0_26 = arith.constant 0 : index
    %58 = vector.load %arg4[%c0_25, %c0_26] : memref<8x32xf32, #tpu.memory_space<vmem>>, vector<8x32xf32>
    tpu.vector_store %arg4[%c0_25, %c0_26], %57 {strides = array<i32>} : memref<8x32xf32, #tpu.memory_space<vmem>>, vector<8x32xf32>,
    return
  }
  func.func @transform_0(%arg0: i32) -> (i32, i32) {
    %c0_i32 = arith.constant 0 : i32
    %c0_i32_0 = arith.constant 0 : i32
    return %arg0, %c0_i32 : i32, i32
  }
  func.func @transform_1(%arg0: i32) -> (i32, i32, i32) {
    %c0_i32 = arith.constant 0 : i32
    %c0_i32_0 = arith.constant 0 : i32
    %c0_i32_1 = arith.constant 0 : i32
    %c0_i32_2 = arith.constant 0 : i32
    return %c0_i32, %c0_i32_0, %c0_i32_1 : i32, i32, i32
  }
  func.func @transform_2(%arg0: i32) -> (i32, i32, i32) {
    %c0_i32 = arith.constant 0 : i32
    %c0_i32_0 = arith.constant 0 : i32
    %c0_i32_1 = arith.constant 0 : i32
    %c0_i32_2 = arith.constant 0 : i32
    return %c0_i32, %c0_i32_0, %c0_i32_1 : i32, i32, i32
  }
  func.func @transform_3(%arg0: i32) -> (i32, i32) {
    %c0_i32 = arith.constant 0 : i32
    %c0_i32_0 = arith.constant 0 : i32
    return %arg0, %c0_i32 : i32, i32
  }
}

module attributes {stable_mosaic.version = 11 : i64} {
  func.func @kernel(%arg0: i32, %arg1: memref<8x32xbf16, #tpu.memory_space<vmem>>, %arg2: memref<3x32x256xbf16, #tpu.memory_space<vmem>>, %arg3: memref<3x128x32xbf16, #tpu.memory_space<vmem>>, %arg4: memref<8x32xf32, #tpu.memory_space<vmem>>) attributes {dimension_semantics = [#tpu.dimension_semantics<parallel>], iteration_bounds = array<i64: 2>, scalar_prefetch = 0 : i64, scratch_operands = 0 : i64, tpu.core_type = #tpu.core_type<tc>, window_params = [{transform_indices = @transform_0, window_bounds = array<i64: 8, 32>}, {pipeline_mode = #tpu.pipeline_mode<synchronous>, transform_indices = @transform_1, window_bounds = array<i64: 3, 32, 256>}, {pipeline_mode = #tpu.pipeline_mode<synchronous>, transform_indices = @transform_2, window_bounds = array<i64: 3, 128, 32>}, {transform_indices = @transform_3, window_bounds = array<i64: 8, 32>}]} {
    %c0 = arith.constant 0 : index
    %c0_0 = arith.constant 0 : index
    %0 = vector.load %arg1[%c0, %c0_0] : memref<8x32xbf16, #tpu.memory_space<vmem>>, vector<8x32xbf16>
    %c0_i32 = arith.constant 0 : i32
    %1 = arith.index_cast %c0_i32 : i32 to index
    %c0_1 = arith.constant 0 : index
    %c0_2 = arith.constant 0 : index
    %2 = vector.load %arg2[%1, %c0_1, %c0_2] : memref<3x32x256xbf16, #tpu.memory_space<vmem>>, vector<1x32x256xbf16>
    %3 = vector.shape_cast %2 : vector<1x32x256xbf16> to vector<32x256xbf16>
    %cst = arith.constant dense<0.000000e+00> : vector<8x256xf32>
    %4 = tpu.matmul %0, %3, %cst {dimension_numbers = #tpu.dot_dimension_numbers<[1], [0], [0], [1], [0, 0, 1, 1], [], []>} : vector<8x32xbf16>, vector<32x256xbf16>, vector<8x256xf32> -> vector<8x256xf32>
    %5 = vector.extract_strided_slice %4 {offsets = [0, 0], sizes = [8, 128], strides = [1, 1]} : vector<8x256xf32> to vector<8x128xf32>
    %6 = vector.extract_strided_slice %4 {offsets = [0, 128], sizes = [8, 128], strides = [1, 1]} : vector<8x256xf32> to vector<8x128xf32>
    %cst_3 = arith.constant 0.000000e+00 : f32
    %7 = vector.broadcast %cst_3 : f32 to vector<8x128xf32>
    %8 = arith.subf %7, %5 : vector<8x128xf32>
    %9 = math.exp %8 : vector<8x128xf32>
    %cst_4 = arith.constant 1.000000e+00 : f32
    %10 = vector.broadcast %cst_4 : f32 to vector<8x128xf32>
    %11 = arith.addf %10, %9 : vector<8x128xf32>
    %12 = tpu.reciprocal %11 {approx = true} : vector<8x128xf32> -> vector<8x128xf32>
    %13 = arith.mulf %5, %12 : vector<8x128xf32>
    %14 = arith.mulf %13, %6 : vector<8x128xf32>
    %15 = arith.truncf %14 : vector<8x128xf32> to vector<8x128xbf16>
    %16 = arith.index_cast %c0_i32 : i32 to index
    %c0_5 = arith.constant 0 : index
    %c0_6 = arith.constant 0 : index
    %17 = vector.load %arg3[%16, %c0_5, %c0_6] : memref<3x128x32xbf16, #tpu.memory_space<vmem>>, vector<1x128x32xbf16>
    %18 = vector.shape_cast %17 : vector<1x128x32xbf16> to vector<128x32xbf16>
    %cst_7 = arith.constant dense<0.000000e+00> : vector<8x32xf32>
    %19 = tpu.matmul %15, %18, %cst_7 {dimension_numbers = #tpu.dot_dimension_numbers<[1], [0], [0], [1], [0, 0, 1, 1], [], []>} : vector<8x128xbf16>, vector<128x32xbf16>, vector<8x32xf32> -> vector<8x32xf32>
    %20 = arith.truncf %19 : vector<8x32xf32> to vector<8x32xbf16>
    %c1_i32 = arith.constant 1 : i32
    %21 = arith.index_cast %c1_i32 : i32 to index
    %c0_8 = arith.constant 0 : index
    %c0_9 = arith.constant 0 : index
    %22 = vector.load %arg2[%21, %c0_8, %c0_9] : memref<3x32x256xbf16, #tpu.memory_space<vmem>>, vector<1x32x256xbf16>
    %23 = vector.shape_cast %22 : vector<1x32x256xbf16> to vector<32x256xbf16>
    %cst_10 = arith.constant dense<0.000000e+00> : vector<8x256xf32>
    %24 = tpu.matmul %20, %23, %cst_10 {dimension_numbers = #tpu.dot_dimension_numbers<[1], [0], [0], [1], [0, 0, 1, 1], [], []>} : vector<8x32xbf16>, vector<32x256xbf16>, vector<8x256xf32> -> vector<8x256xf32>
    %25 = vector.extract_strided_slice %24 {offsets = [0, 0], sizes = [8, 128], strides = [1, 1]} : vector<8x256xf32> to vector<8x128xf32>
    %26 = vector.extract_strided_slice %24 {offsets = [0, 128], sizes = [8, 128], strides = [1, 1]} : vector<8x256xf32> to vector<8x128xf32>
    %cst_11 = arith.constant 0.000000e+00 : f32
    %27 = vector.broadcast %cst_11 : f32 to vector<8x128xf32>
    %28 = arith.subf %27, %25 : vector<8x128xf32>
    %29 = math.exp %28 : vector<8x128xf32>
    %cst_12 = arith.constant 1.000000e+00 : f32
    %30 = vector.broadcast %cst_12 : f32 to vector<8x128xf32>
    %31 = arith.addf %30, %29 : vector<8x128xf32>
    %32 = tpu.reciprocal %31 {approx = true} : vector<8x128xf32> -> vector<8x128xf32>
    %33 = arith.mulf %25, %32 : vector<8x128xf32>
    %34 = arith.mulf %33, %26 : vector<8x128xf32>
    %35 = arith.truncf %34 : vector<8x128xf32> to vector<8x128xbf16>
    %36 = arith.index_cast %c1_i32 : i32 to index
    %c0_13 = arith.constant 0 : index
    %c0_14 = arith.constant 0 : index
    %37 = vector.load %arg3[%36, %c0_13, %c0_14] : memref<3x128x32xbf16, #tpu.memory_space<vmem>>, vector<1x128x32xbf16>
    %38 = vector.shape_cast %37 : vector<1x128x32xbf16> to vector<128x32xbf16>
    %cst_15 = arith.constant dense<0.000000e+00> : vector<8x32xf32>
    %39 = tpu.matmul %35, %38, %cst_15 {dimension_numbers = #tpu.dot_dimension_numbers<[1], [0], [0], [1], [0, 0, 1, 1], [], []>} : vector<8x128xbf16>, vector<128x32xbf16>, vector<8x32xf32> -> vector<8x32xf32>
    %40 = arith.truncf %39 : vector<8x32xf32> to vector<8x32xbf16>
    %c2_i32 = arith.constant 2 : i32
    %c2 = arith.constant 2 : index
    %c0_16 = arith.constant 0 : index
    %c0_17 = arith.constant 0 : index
    %41 = vector.load %arg2[%c2, %c0_16, %c0_17] : memref<3x32x256xbf16, #tpu.memory_space<vmem>>, vector<1x32x256xbf16>
    %42 = vector.shape_cast %41 : vector<1x32x256xbf16> to vector<32x256xbf16>
    %cst_18 = arith.constant dense<0.000000e+00> : vector<8x256xf32>
    %43 = tpu.matmul %40, %42, %cst_18 {dimension_numbers = #tpu.dot_dimension_numbers<[1], [0], [0], [1], [0, 0, 1, 1], [], []>} : vector<8x32xbf16>, vector<32x256xbf16>, vector<8x256xf32> -> vector<8x256xf32>
    %44 = vector.extract_strided_slice %43 {offsets = [0, 0], sizes = [8, 128], strides = [1, 1]} : vector<8x256xf32> to vector<8x128xf32>
    %45 = vector.extract_strided_slice %43 {offsets = [0, 128], sizes = [8, 128], strides = [1, 1]} : vector<8x256xf32> to vector<8x128xf32>
    %cst_19 = arith.constant 0.000000e+00 : f32
    %46 = vector.broadcast %cst_19 : f32 to vector<8x128xf32>
    %47 = arith.subf %46, %44 : vector<8x128xf32>
    %48 = math.exp %47 : vector<8x128xf32>
    %cst_20 = arith.constant 1.000000e+00 : f32
    %49 = vector.broadcast %cst_20 : f32 to vector<8x128xf32>
    %50 = arith.addf %49, %48 : vector<8x128xf32>
    %51 = tpu.reciprocal %50 {approx = true} : vector<8x128xf32> -> vector<8x128xf32>
    %52 = arith.mulf %44, %51 : vector<8x128xf32>
    %53 = arith.mulf %52, %45 : vector<8x128xf32>
    %54 = arith.truncf %53 : vector<8x128xf32> to vector<8x128xbf16>
    %c2_21 = arith.constant 2 : index
    %c0_22 = arith.constant 0 : index
    %c0_23 = arith.constant 0 : index
    %55 = vector.load %arg3[%c2_21, %c0_22, %c0_23] : memref<3x128x32xbf16, #tpu.memory_space<vmem>>, vector<1x128x32xbf16>
    %56 = vector.shape_cast %55 : vector<1x128x32xbf16> to vector<128x32xbf16>
    %cst_24 = arith.constant dense<0.000000e+00> : vector<8x32xf32>
    %57 = tpu.matmul %54, %56, %cst_24 {dimension_numbers = #tpu.dot_dimension_numbers<[1], [0], [0], [1], [0, 0, 1, 1], [], []>} : vector<8x128xbf16>, vector<128x32xbf16>, vector<8x32xf32> -> vector<8x32xf32>
    %c0_25 = arith.constant 0 : index
    %c0_26 = arith.constant 0 : index
    %58 = vector.load %arg4[%c0_25, %c0_26] : memref<8x32xf32, #tpu.memory_space<vmem>>, vector<8x32xf32>
    tpu.vector_store %arg4[%c0_25, %c0_26], %57 {strides = array<i32>} : memref<8x32xf32, #tpu.memory_space<vmem>>, vector<8x32xf32>,
    return
  }
  func.func @transform_0(%arg0: i32) -> (i32, i32) {
    %c0_i32 = arith.constant 0 : i32
    %c0_i32_0 = arith.constant 0 : i32
    return %arg0, %c0_i32 : i32, i32
  }
  func.func @transform_1(%arg0: i32) -> (i32, i32, i32) {
    %c0_i32 = arith.constant 0 : i32
    %c0_i32_0 = arith.constant 0 : i32
    %c0_i32_1 = arith.constant 0 : i32
    %c0_i32_2 = arith.constant 0 : i32
    return %c0_i32, %c0_i32_0, %c0_i32_1 : i32, i32, i32
  }
  func.func @transform_2(%arg0: i32) -> (i32, i32, i32) {
    %c0_i32 = arith.constant 0 : i32
    %c0_i32_0 = arith.constant 0 : i32
    %c0_i32_1 = arith.constant 0 : i32
    %c0_i32_2 = arith.constant 0 : i32
    return %c0_i32, %c0_i32_0, %c0_i32_1 : i32, i32, i32
  }
  func.func @transform_3(%arg0: i32) -> (i32, i32) {
    %c0_i32 = arith.constant 0 : i32
    %c0_i32_0 = arith.constant 0 : i32
    return %arg0, %c0_i32 : i32, i32
  }
}

</mosaic_0001>

<llo_original>
// kernel: tpu_custom_call.1
$region0: #{tpu_custom_call.1}
  #allocation0 [shape = 'u32[]', space=smem, size = 0x4, offset = 0x4, fixed_abs, tag = 'smem constant byte address 0x4 - core index']
  #allocation1 [shape = 'u32[144,128]{1,0:T(1,128)}', space=vmem, size = 0x12000, scoped, tag = 'internal scratch']
  %s0 = inlined_call_operand.vmem [shape: bf16[16,32], index: 0, kind: input, shape index: {}]
  %s1 = inlined_call_operand.vmem [shape: bf16[3,32,256], index: 1, kind: input, shape index: {}]
  %s2 = inlined_call_operand.vmem [shape: bf16[3,128,32], index: 2, kind: input, shape index: {}]
  %s3 = inlined_call_operand.hbm [shape: f32[16,32], index: 3, kind: output, shape index: {}]
  %s4 = sld [smem:[#allocation0]]
  $region45: #{tpu_custom_call.1} parent=0
    _
  %s6 = ssub.s32 1, %s4
  %s7 = scalar_select 0, %s6, %s4
  $region1: #{tpu_custom_call.1} parent=0
    #allocation2 [shape = 'u8[8192]{0}', space=vmem, size = 0x2000, scoped, tag = 'output window, operand 0']
    #allocation3 [shape = 's32[2]{0}', space=sflag, size = 0x8, scoped, tag = 'scoped memory for tpu_custom_call.1']
    %8 = vsyncpa [#allocation3], 0
    %s9 = scalar_lea.sflag [#allocation3], 1
    %10 = vsyncpa %s9, 0
    loop: start=0, step=1, limit=4
    $region2: #{tpu_custom_call.1} parent=1 // loop_pre_header
      _
    $region3: #{tpu_custom_call.1} parent=1 // loop_header
      %s12 = sphi 0, %s16
      %p13 = scmp.ge.s32.totalorder %s12, 4
      %s22 = sphi 0, %s24
      %s25 = sphi 0, %s22
      %s26 = sphi 0, %s25
      %s42 = sphi 0, %s26
      %s46 = sphi 0, %s46
      %s48 = sphi 0, %s46
      %s49 = sphi 0, %s48
      %s63 = sphi 0, %s49
      %s67 = sphi 0, %s67
      %s69 = sphi 0, %s67
      %s70 = sphi 0, %s69
      %s84 = sphi 0, %s70
      %s90 = sphi 0, %s92
      %s93 = sphi 0, %s90
      %s94 = sphi 0, %s93
      %s110 = sphi 0, %s94
    $region4: #{tpu_custom_call.1} parent=1 // loop_header_branch
      %15 = sbr.rel (%p13) target = $region8
    $region5: #{tpu_custom_call.1} parent=1 // loop_body
      %s17 = ssub.s32 %s12, 1
      %s18 = ssub.s32 %s12, 2
      %s19 = sadd.s32 %s12, 1
      %s20 = ssub.s32 %s12, %s19
      %p21 = scmp.eq.s32.totalorder %s20, 0
      %s23 = sadd.s32 %s22, 1
      %s24 = scalar_select %p21, %s22, %s23
      %p27 = pneg %p21
      %p28 = scmp.eq.s32.totalorder %s12, 1
      %p29 = por %p27, %p28
      %p30 = scmp.ne.s32.totalorder %s22, %s25
      %p31 = scmp.eq.s32.totalorder %s12, 0
      %p32 = por %p30, %p31
      %p33 = scmp.ne.s32.totalorder %s22, %s25
      %p34 = scmp.eq.s32.totalorder %s17, 1
      %p35 = por %p33, %p34
      %p36 = scmp.ne.s32.totalorder %s25, %s26
      %p37 = scmp.eq.s32.totalorder %s17, 0
      %p38 = por %p36, %p37
      %p39 = scmp.ne.s32.totalorder %s25, %s26
      %p40 = scmp.eq.s32.totalorder %s18, 1
      %p41 = por %p39, %p40
      %p43 = scmp.ne.s32.totalorder %s26, %s42
      %p44 = scmp.eq.s32.totalorder %s18, 0
      %p45 = por %p43, %p44
      %s47 = sadd.s32 %s46, 1
      %p50 = scmp.eq.s32.totalorder %s12, 1
      %p51 = scmp.ne.s32.totalorder %s46, %s48
      %p52 = scmp.eq.s32.totalorder %s12, 0
      %p53 = por %p51, %p52
      %p54 = scmp.ne.s32.totalorder %s46, %s48
      %p55 = scmp.eq.s32.totalorder %s17, 1
      %p56 = por %p54, %p55
      %p57 = scmp.ne.s32.totalorder %s48, %s49
      %p58 = scmp.eq.s32.totalorder %s17, 0
      %p59 = por %p57, %p58
      %p60 = scmp.ne.s32.totalorder %s48, %s49
      %p61 = scmp.eq.s32.totalorder %s18, 1
      %p62 = por %p60, %p61
      %p64 = scmp.ne.s32.totalorder %s49, %s63
      %p65 = scmp.eq.s32.totalorder %s18, 0
      %p66 = por %p64, %p65
      %s68 = sadd.s32 %s67, 1
      %p71 = scmp.eq.s32.totalorder %s12, 1
      %p72 = scmp.ne.s32.totalorder %s67, %s69
      %p73 = scmp.eq.s32.totalorder %s12, 0
      %p74 = por %p72, %p73
      %p75 = scmp.ne.s32.totalorder %s67, %s69
      %p76 = scmp.eq.s32.totalorder %s17, 1
      %p77 = por %p75, %p76
      %p78 = scmp.ne.s32.totalorder %s69, %s70
      %p79 = scmp.eq.s32.totalorder %s17, 0
      %p80 = por %p78, %p79
      %p81 = scmp.ne.s32.totalorder %s69, %s70
      %p82 = scmp.eq.s32.totalorder %s18, 1
      %p83 = por %p81, %p82
      %p85 = scmp.ne.s32.totalorder %s70, %s84
      %p86 = scmp.eq.s32.totalorder %s18, 0
      %p87 = por %p85, %p86
      %s88 = ssub.s32 %s12, %s19
      %p89 = scmp.eq.s32.totalorder %s88, 0
      %s91 = sadd.s32 %s90, 1
      %s92 = scalar_select %p89, %s90, %s91
      %p95 = pneg %p89
      %p96 = scmp.eq.s32.totalorder %s12, 1
      %p97 = por %p95, %p96
      %p98 = scmp.ne.s32.totalorder %s90, %s93
      %p99 = scmp.eq.s32.totalorder %s12, 0
      %p100 = por %p98, %p99
      %p101 = scmp.ne.s32.totalorder %s90, %s93
      %p102 = scmp.eq.s32.totalorder %s17, 1
      %p103 = por %p101, %p102
      %p104 = scmp.ne.s32.totalorder %s93, %s94
      %p105 = scmp.eq.s32.totalorder %s17, 0
      %p106 = por %p104, %p105
      %p107 = scmp.ne.s32.totalorder %s93, %s94
      %p108 = scmp.eq.s32.totalorder %s18, 1
      %p109 = por %p107, %p108
      %p111 = scmp.ne.s32.totalorder %s94, %s110
      %p112 = scmp.eq.s32.totalorder %s18, 0
      %p113 = por %p111, %p112
      %p114 = scmp.le.s32.totalorder 1, %s12
      %p115 = scmp.lt.s32.totalorder %s12, 3
      %p116 = pnand %p114, %p115
      %p117 = pneg %p116
      // Predicated region
      $region9: #{tpu_custom_call.1} parent=5 // pred_check
        _
      $region10: #{tpu_custom_call.1} parent=5 // pred_check_branch
        %119 = sbr.rel (%p116) target = $region12
      $region11: #{tpu_custom_call.1} parent=5 // pred_region
        %s120 = ssub.s32 %s12, 1
        // Predicated region
        $region13: #{tpu_custom_call.1} parent=11 // pred_check
          %p121 = pneg %p59
        $region14: #{tpu_custom_call.1} parent=11 // pred_check_branch
          %123 = sbr.rel (%p121) target = $region16
        $region15: #{tpu_custom_call.1} parent=11 // pred_region
          _
        $region16: #{tpu_custom_call.1} parent=11 // pred_fallthru
          _
        // Predicated region
        $region17: #{tpu_custom_call.1} parent=11 // pred_check
          %p124 = pneg %p80
        $region18: #{tpu_custom_call.1} parent=11 // pred_check_branch
          %126 = sbr.rel (%p124) target = $region20
        $region19: #{tpu_custom_call.1} parent=11 // pred_region
          _
        $region20: #{tpu_custom_call.1} parent=11 // pred_fallthru
          _
      $region12: #{tpu_custom_call.1} parent=5 // pred_fallthru
        _
      %p127 = scmp.lt.s32.totalorder %s12, 2
      // Predicated region
      $region21: #{tpu_custom_call.1} parent=5 // pred_check
        %p128 = pneg %p127
      $region22: #{tpu_custom_call.1} parent=5 // pred_check_branch
        %130 = sbr.rel (%p128) target = $region24
      $region23: #{tpu_custom_call.1} parent=5 // pred_region
        // Predicated region
        $region25: #{tpu_custom_call.1} parent=23 // pred_check
          %p131 = pneg %p32
        $region26: #{tpu_custom_call.1} parent=23 // pred_check_branch
          %133 = sbr.rel (%p131) target = $region28
        $region27: #{tpu_custom_call.1} parent=23 // pred_region
          %p134 = scmp.lt.s32.totalorder %s12, 1
          %s135 = scalar_select %p134, %s12, 1
          %s136 = smul.addr %s135, 4
          %s137 = scalar_lea.vmem %s0, %s136
        $region28: #{tpu_custom_call.1} parent=23 // pred_fallthru
          _
      $region24: #{tpu_custom_call.1} parent=5 // pred_fallthru
        _
      %p138 = scmp.le.s32.totalorder 1, %s12
      %p139 = scmp.lt.s32.totalorder %s12, 3
      %p140 = pnand %p138, %p139
      %p141 = pneg %p140
      // Predicated region
      $region29: #{tpu_custom_call.1} parent=5 // pred_check
        _
      $region30: #{tpu_custom_call.1} parent=5 // pred_check_branch
        %143 = sbr.rel (%p140) target = $region32
      $region31: #{tpu_custom_call.1} parent=5 // pred_region
        %s144 = ssub.s32 %s12, 1
        %p145 = scmp.lt.s32.totalorder %s17, 1
        %s146 = scalar_select %p145, %s17, 1
        %s147 = smul.addr %s146, 4
        %s148 = scalar_lea.vmem %s0, %s147
        %p149 = pneg %p38
        %p150 = pneg %p35
        %p151 = pneg %p59
        %p152 = pneg %p56
        %p153 = pneg %p80
        %p154 = pneg %p77
        %p155 = pneg %p106
        %p156 = pneg %p103
        %s157 = sand.u32 %s93, 1
        %s158 = scalar_lea.sflag [#allocation3], %s157
        %s159 = sand.u32 %s93, 1
        %s160 = smul.addr %s159, 8
        %s161 = scalar_lea.vmem [#allocation2], %s160
        %p162 = scmp.lt.s32.totalorder %s17, 1
        %s163 = scalar_select %p162, %s17, 1
        %s164 = smul.addr %s163, 4
        %s165 = scalar_lea.vmem %s0, %s164
        %v167 = vld [vmem:[%s165] sm:$0xf]
        %v168 = vld [vmem:[%s1] sm:$0xff]
        %v169 = vld [vmem:[%s1 + $0x8] sm:$0xff]
        %v170 = vld [vmem:[%s1 + $0x10] sm:$0xff]
        %v171 = vld [vmem:[%s1 + $0x18] sm:$0xff]
        %v176 = vunpack.c.l.b16 %v168
        %v177 = vunpack.c.h.b16 %v168
        %v178 = vunpack.c.l.b16 %v169
        %v179 = vunpack.c.h.b16 %v169
        %v180 = vunpack.c.l.b16 %v170
        %v181 = vunpack.c.h.b16 %v170
        %v182 = vunpack.c.l.b16 %v171
        %v183 = vunpack.c.h.b16 %v171
        %v184 = vpack.c.b16 %v178, %v176
        %v185 = vpack.c.b16 %v179, %v177
        %v186 = vpack.c.b16 %v182, %v180
        %v187 = vpack.c.b16 %v183, %v181
        %vm192 = vcmask 261120
        %v194 = vsel %vm192, %v167, 0
        %196 = vmatprep.subr.bf16.mxu0 %v185
        %197 = vmatpush1.bf16.msra.mxu0 %v184
        %198 = vmatprep.subr.bf16.mxu0 %v187
        %199 = vmatpush1.bf16.msra.mxu0 %v186
        %200 = vmatprep.subr.bf16.mxu0 0
        %201 = vmatpush1.bf16.msra.mxu0 0
        %202 = vmatprep.subr.bf16.mxu0 0
        %203 = vmatpush1.bf16.msra.mxu0 0
        %204 = vmatprep.subr.bf16.mxu0 0
        %205 = vmatpush1.bf16.msra.mxu0 0
        %206 = vmatprep.subr.bf16.mxu0 0
        %207 = vmatpush1.bf16.msra.mxu0 0
        %208 = vmatprep.subr.bf16.mxu0 0
        %209 = vmatpush1.bf16.msra.mxu0 0
        %210 = vmatprep.subr.bf16.mxu0 0
        %211 = vmatpush1.bf16.msra.mxu0 0
        %212 = vmatprep.subr.bf16.mxu0 0
        %213 = vmatpush1.bf16.msra.mxu0 0
        %214 = vmatprep.subr.bf16.mxu0 0
        %215 = vmatpush1.bf16.msra.mxu0 0
        %216 = vmatprep.subr.bf16.mxu0 0
        %217 = vmatpush1.bf16.msra.mxu0 0
        %218 = vmatprep.subr.bf16.mxu0 0
        %219 = vmatpush1.bf16.msra.mxu0 0
        %220 = vmatprep.subr.bf16.mxu0 0
        %221 = vmatpush1.bf16.msra.mxu0 0
        %222 = vmatprep.subr.bf16.mxu0 0
        %223 = vmatpush1.bf16.msra.mxu0 0
        %224 = vmatprep.subr.bf16.mxu0 0
        %225 = vmatpush1.bf16.msra.mxu0 0
        %226 = vmatprep.subr.bf16.mxu0 0
        %227 = vmatpush1.bf16.msra.mxu0 0
        %228 = vmatprep.mubr.bf16.mxu0 0
        %229 = vmatmul.mubr.bf16.gmra.mrb[0].mxu0 %v194
        %v230 = vpop.f32.mrb[0].mxu0
        %v231 = vadd.f32 0.0, %v230
        %v232 = vpop.f32.mrb[0].mxu0
        %v233 = vadd.f32 0.0, %v232
        %v234 = vpop.f32.mrb[0].mxu0
        %v235 = vpop.f32.mrb[0].mxu0
        %236 = vdwg.mxu0
        %v237 = vsub.f32 0.0, %v231
        %v238 = vmul.f32 %v237, 1.442695
        %v239 = vpow.pop %v238
        %v240 = vadd.f32 %v239, 1.0
        %v241 = vrcp.pop %v240
        %v242 = vmul.f32 %v231, %v241
        %v243 = vmul.f32 %v242, %v233
        %v244 = vpack.c.bf16 %v243, %v243
        %v245 = vld [vmem:[%s2] sm:$0xf]
        %v246 = vld [vmem:[%s2 + $0x4] sm:$0xf]
        %v247 = vld [vmem:[%s2 + $0x8] sm:$0xf]
        %v248 = vld [vmem:[%s2 + $0xc] sm:$0xf]
        %v249 = vld [vmem:[%s2 + $0x10] sm:$0xf]
        %v250 = vld [vmem:[%s2 + $0x14] sm:$0xf]
        %v251 = vld [vmem:[%s2 + $0x18] sm:$0xf]
        %v252 = vld [vmem:[%s2 + $0x1c] sm:$0xf]
        %v253 = vld [vmem:[%s2 + $0x20] sm:$0xf]
        %v254 = vld [vmem:[%s2 + $0x24] sm:$0xf]
        %v255 = vld [vmem:[%s2 + $0x28] sm:$0xf]
        %v256 = vld [vmem:[%s2 + $0x2c] sm:$0xf]
        %v257 = vld [vmem:[%s2 + $0x30] sm:$0xf]
        %v258 = vld [vmem:[%s2 + $0x34] sm:$0xf]
        %v259 = vld [vmem:[%s2 + $0x38] sm:$0xf]
        %v260 = vld [vmem:[%s2 + $0x3c] sm:$0xf]
        %v277 = vunpack.c.l.b16 %v245
        %v278 = vunpack.c.l.b16 %v246
        %v279 = vunpack.c.l.b16 %v247
        %v280 = vunpack.c.l.b16 %v248
        %v281 = vunpack.c.l.b16 %v249
        %v282 = vunpack.c.l.b16 %v250
        %v283 = vunpack.c.l.b16 %v251
        %v284 = vunpack.c.l.b16 %v252
        %v285 = vunpack.c.l.b16 %v253
        %v286 = vunpack.c.l.b16 %v254
        %v287 = vunpack.c.l.b16 %v255
        %v288 = vunpack.c.l.b16 %v256
        %v289 = vunpack.c.l.b16 %v257
        %v290 = vunpack.c.l.b16 %v258
        %v291 = vunpack.c.l.b16 %v259
        %v292 = vunpack.c.l.b16 %v260
        %v293 = vpack.c.b16 %v278, %v277
        %v294 = vpack.c.b16 %v280, %v279
        %v295 = vpack.c.b16 %v282, %v281
        %v296 = vpack.c.b16 %v284, %v283
        %v297 = vpack.c.b16 %v286, %v285
        %v298 = vpack.c.b16 %v288, %v287
        %v299 = vpack.c.b16 %v290, %v289
        %v300 = vpack.c.b16 %v292, %v291
        %309 = vmatprep.subr.bf16.mxu0 0
        %310 = vmatpush1.bf16.msra.mxu0 %v293
        %311 = vmatprep.subr.bf16.mxu0 0
        %312 = vmatpush1.bf16.msra.mxu0 %v294
        %313 = vmatprep.subr.bf16.mxu0 0
        %314 = vmatpush1.bf16.msra.mxu0 %v295
        %315 = vmatprep.subr.bf16.mxu0 0
        %316 = vmatpush1.bf16.msra.mxu0 %v296
        %317 = vmatprep.subr.bf16.mxu0 0
        %318 = vmatpush1.bf16.msra.mxu0 %v297
        %319 = vmatprep.subr.bf16.mxu0 0
        %320 = vmatpush1.bf16.msra.mxu0 %v298
        %321 = vmatprep.subr.bf16.mxu0 0
        %322 = vmatpush1.bf16.msra.mxu0 %v299
        %323 = vmatprep.subr.bf16.mxu0 0
        %324 = vmatpush1.bf16.msra.mxu0 %v300
        %325 = vmatprep.subr.bf16.mxu0 0
        %326 = vmatpush1.bf16.msra.mxu0 0
        %327 = vmatprep.subr.bf16.mxu0 0
        %328 = vmatpush1.bf16.msra.mxu0 0
        %329 = vmatprep.subr.bf16.mxu0 0
        %330 = vmatpush1.bf16.msra.mxu0 0
        %331 = vmatprep.subr.bf16.mxu0 0
        %332 = vmatpush1.bf16.msra.mxu0 0
        %333 = vmatprep.subr.bf16.mxu0 0
        %334 = vmatpush1.bf16.msra.mxu0 0
        %335 = vmatprep.subr.bf16.mxu0 0
        %336 = vmatpush1.bf16.msra.mxu0 0
        %337 = vmatprep.subr.bf16.mxu0 0
        %338 = vmatpush1.bf16.msra.mxu0 0
        %339 = vmatprep.subr.bf16.mxu0 0
        %340 = vmatpush1.bf16.msra.mxu0 0
        %341 = vmatprep.mubr.bf16.mxu0 0
        %342 = vmatmul.mubr.bf16.gmra.mrb[0].mxu0 %v244
        %v343 = vpop.f32.mrb[0].mxu0
        %v344 = vadd.f32 0.0, %v343
        %v345 = vpop.f32.mrb[0].mxu0
        %v346 = vpop.f32.mrb[0].mxu0
        %v347 = vpop.f32.mrb[0].mxu0
        %348 = vdwg.mxu0
        %v349 = vpack.c.bf16 %v344, %v344
        %s350 = scalar_lea.vmem %s1, 32
        %v351 = vld [vmem:[%s350] sm:$0xff]
        %v352 = vld [vmem:[%s350 + $0x8] sm:$0xff]
        %v353 = vld [vmem:[%s350 + $0x10] sm:$0xff]
        %v354 = vld [vmem:[%s350 + $0x18] sm:$0xff]
        %v359 = vunpack.c.l.b16 %v351
        %v360 = vunpack.c.h.b16 %v351
        %v361 = vunpack.c.l.b16 %v352
        %v362 = vunpack.c.h.b16 %v352
        %v363 = vunpack.c.l.b16 %v353
        %v364 = vunpack.c.h.b16 %v353
        %v365 = vunpack.c.l.b16 %v354
        %v366 = vunpack.c.h.b16 %v354
        %v367 = vpack.c.b16 %v361, %v359
        %v368 = vpack.c.b16 %v362, %v360
        %v369 = vpack.c.b16 %v365, %v363
        %v370 = vpack.c.b16 %v366, %v364
        %v376 = vsel %vm192, %v349, 0
        %378 = vmatprep.subr.bf16.mxu0 %v368
        %379 = vmatpush1.bf16.msra.mxu0 %v367
        %380 = vmatprep.subr.bf16.mxu0 %v370
        %381 = vmatpush1.bf16.msra.mxu0 %v369
        %382 = vmatprep.subr.bf16.mxu0 0
        %383 = vmatpush1.bf16.msra.mxu0 0
        %384 = vmatprep.subr.bf16.mxu0 0
        %385 = vmatpush1.bf16.msra.mxu0 0
        %386 = vmatprep.subr.bf16.mxu0 0
        %387 = vmatpush1.bf16.msra.mxu0 0
        %388 = vmatprep.subr.bf16.mxu0 0
        %389 = vmatpush1.bf16.msra.mxu0 0
        %390 = vmatprep.subr.bf16.mxu0 0
        %391 = vmatpush1.bf16.msra.mxu0 0
        %392 = vmatprep.subr.bf16.mxu0 0
        %393 = vmatpush1.bf16.msra.mxu0 0
        %394 = vmatprep.subr.bf16.mxu0 0
        %395 = vmatpush1.bf16.msra.mxu0 0
        %396 = vmatprep.subr.bf16.mxu0 0
        %397 = vmatpush1.bf16.msra.mxu0 0
        %398 = vmatprep.subr.bf16.mxu0 0
        %399 = vmatpush1.bf16.msra.mxu0 0
        %400 = vmatprep.subr.bf16.mxu0 0
        %401 = vmatpush1.bf16.msra.mxu0 0
        %402 = vmatprep.subr.bf16.mxu0 0
        %403 = vmatpush1.bf16.msra.mxu0 0
        %404 = vmatprep.subr.bf16.mxu0 0
        %405 = vmatpush1.bf16.msra.mxu0 0
        %406 = vmatprep.subr.bf16.mxu0 0
        %407 = vmatpush1.bf16.msra.mxu0 0
        %408 = vmatprep.subr.bf16.mxu0 0
        %409 = vmatpush1.bf16.msra.mxu0 0
        %410 = vmatprep.mubr.bf16.mxu0 0
        %411 = vmatmul.mubr.bf16.gmra.mrb[0].mxu0 %v376
        %v412 = vpop.f32.mrb[0].mxu0
        %v413 = vadd.f32 0.0, %v412
        %v414 = vpop.f32.mrb[0].mxu0
        %v415 = vadd.f32 0.0, %v414
        %v416 = vpop.f32.mrb[0].mxu0
        %v417 = vpop.f32.mrb[0].mxu0
        %418 = vdwg.mxu0
        %v419 = vsub.f32 0.0, %v413
        %v420 = vmul.f32 %v419, 1.442695
        %v421 = vpow.pop %v420
        %v422 = vadd.f32 %v421, 1.0
        %v423 = vrcp.pop %v422
        %v424 = vmul.f32 %v413, %v423
        %v425 = vmul.f32 %v424, %v415
        %v426 = vpack.c.bf16 %v425, %v425
        %s427 = scalar_lea.vmem %s2, 64
        %v428 = vld [vmem:[%s427] sm:$0xf]
        %v429 = vld [vmem:[%s427 + $0x4] sm:$0xf]
        %v430 = vld [vmem:[%s427 + $0x8] sm:$0xf]
        %v431 = vld [vmem:[%s427 + $0xc] sm:$0xf]
        %v432 = vld [vmem:[%s427 + $0x10] sm:$0xf]
        %v433 = vld [vmem:[%s427 + $0x14] sm:$0xf]
        %v434 = vld [vmem:[%s427 + $0x18] sm:$0xf]
        %v435 = vld [vmem:[%s427 + $0x1c] sm:$0xf]
        %v436 = vld [vmem:[%s427 + $0x20] sm:$0xf]
        %v437 = vld [vmem:[%s427 + $0x24] sm:$0xf]
        %v438 = vld [vmem:[%s427 + $0x28] sm:$0xf]
        %v439 = vld [vmem:[%s427 + $0x2c] sm:$0xf]
        %v440 = vld [vmem:[%s427 + $0x30] sm:$0xf]
        %v441 = vld [vmem:[%s427 + $0x34] sm:$0xf]
        %v442 = vld [vmem:[%s427 + $0x38] sm:$0xf]
        %v443 = vld [vmem:[%s427 + $0x3c] sm:$0xf]
        %v460 = vunpack.c.l.b16 %v428
        %v461 = vunpack.c.l.b16 %v429
        %v462 = vunpack.c.l.b16 %v430
        %v463 = vunpack.c.l.b16 %v431
        %v464 = vunpack.c.l.b16 %v432
        %v465 = vunpack.c.l.b16 %v433
        %v466 = vunpack.c.l.b16 %v434
        %v467 = vunpack.c.l.b16 %v435
        %v468 = vunpack.c.l.b16 %v436
        %v469 = vunpack.c.l.b16 %v437
        %v470 = vunpack.c.l.b16 %v438
        %v471 = vunpack.c.l.b16 %v439
        %v472 = vunpack.c.l.b16 %v440
        %v473 = vunpack.c.l.b16 %v441
        %v474 = vunpack.c.l.b16 %v442
        %v475 = vunpack.c.l.b16 %v443
        %v476 = vpack.c.b16 %v461, %v460
        %v477 = vpack.c.b16 %v463, %v462
        %v478 = vpack.c.b16 %v465, %v464
        %v479 = vpack.c.b16 %v467, %v466
        %v480 = vpack.c.b16 %v469, %v468
        %v481 = vpack.c.b16 %v471, %v470
        %v482 = vpack.c.b16 %v473, %v472
        %v483 = vpack.c.b16 %v475, %v474
        %492 = vmatprep.subr.bf16.mxu0 0
        %493 = vmatpush1.bf16.msra.mxu0 %v476
        %494 = vmatprep.subr.bf16.mxu0 0
        %495 = vmatpush1.bf16.msra.mxu0 %v477
        %496 = vmatprep.subr.bf16.mxu0 0
        %497 = vmatpush1.bf16.msra.mxu0 %v478
        %498 = vmatprep.subr.bf16.mxu0 0
        %499 = vmatpush1.bf16.msra.mxu0 %v479
        %500 = vmatprep.subr.bf16.mxu0 0
        %501 = vmatpush1.bf16.msra.mxu0 %v480
        %502 = vmatprep.subr.bf16.mxu0 0
        %503 = vmatpush1.bf16.msra.mxu0 %v481
        %504 = vmatprep.subr.bf16.mxu0 0
        %505 = vmatpush1.bf16.msra.mxu0 %v482
        %506 = vmatprep.subr.bf16.mxu0 0
        %507 = vmatpush1.bf16.msra.mxu0 %v483
        %508 = vmatprep.subr.bf16.mxu0 0
        %509 = vmatpush1.bf16.msra.mxu0 0
        %510 = vmatprep.subr.bf16.mxu0 0
        %511 = vmatpush1.bf16.msra.mxu0 0
        %512 = vmatprep.subr.bf16.mxu0 0
        %513 = vmatpush1.bf16.msra.mxu0 0
        %514 = vmatprep.subr.bf16.mxu0 0
        %515 = vmatpush1.bf16.msra.mxu0 0
        %516 = vmatprep.subr.bf16.mxu0 0
        %517 = vmatpush1.bf16.msra.mxu0 0
        %518 = vmatprep.subr.bf16.mxu0 0
        %519 = vmatpush1.bf16.msra.mxu0 0
        %520 = vmatprep.subr.bf16.mxu0 0
        %521 = vmatpush1.bf16.msra.mxu0 0
        %522 = vmatprep.subr.bf16.mxu0 0
        %523 = vmatpush1.bf16.msra.mxu0 0
        %524 = vmatprep.mubr.bf16.mxu0 0
        %525 = vmatmul.mubr.bf16.gmra.mrb[0].mxu0 %v426
        %v526 = vpop.f32.mrb[0].mxu0
        %v527 = vadd.f32 0.0, %v526
        %v528 = vpop.f32.mrb[0].mxu0
        %v529 = vpop.f32.mrb[0].mxu0
        %v530 = vpop.f32.mrb[0].mxu0
        %531 = vdwg.mxu0
        %v532 = vpack.c.bf16 %v527, %v527
        %s533 = scalar_lea.vmem %s1, 64
        %v534 = vld [vmem:[%s533] sm:$0xff]
        %v535 = vld [vmem:[%s533 + $0x8] sm:$0xff]
        %v536 = vld [vmem:[%s533 + $0x10] sm:$0xff]
        %v537 = vld [vmem:[%s533 + $0x18] sm:$0xff]
        %v542 = vunpack.c.l.b16 %v534
        %v543 = vunpack.c.h.b16 %v534
        %v544 = vunpack.c.l.b16 %v535
        %v545 = vunpack.c.h.b16 %v535
        %v546 = vunpack.c.l.b16 %v536
        %v547 = vunpack.c.h.b16 %v536
        %v548 = vunpack.c.l.b16 %v537
        %v549 = vunpack.c.h.b16 %v537
        %v550 = vpack.c.b16 %v544, %v542
        %v551 = vpack.c.b16 %v545, %v543
        %v552 = vpack.c.b16 %v548, %v546
        %v553 = vpack.c.b16 %v549, %v547
        %v559 = vsel %vm192, %v532, 0
        %561 = vmatprep.subr.bf16.mxu0 %v551
        %562 = vmatpush1.bf16.msra.mxu0 %v550
        %563 = vmatprep.subr.bf16.mxu0 %v553
        %564 = vmatpush1.bf16.msra.mxu0 %v552
        %565 = vmatprep.subr.bf16.mxu0 0
        %566 = vmatpush1.bf16.msra.mxu0 0
        %567 = vmatprep.subr.bf16.mxu0 0
        %568 = vmatpush1.bf16.msra.mxu0 0
        %569 = vmatprep.subr.bf16.mxu0 0
        %570 = vmatpush1.bf16.msra.mxu0 0
        %571 = vmatprep.subr.bf16.mxu0 0
        %572 = vmatpush1.bf16.msra.mxu0 0
        %573 = vmatprep.subr.bf16.mxu0 0
        %574 = vmatpush1.bf16.msra.mxu0 0
        %575 = vmatprep.subr.bf16.mxu0 0
        %576 = vmatpush1.bf16.msra.mxu0 0
        %577 = vmatprep.subr.bf16.mxu0 0
        %578 = vmatpush1.bf16.msra.mxu0 0
        %579 = vmatprep.subr.bf16.mxu0 0
        %580 = vmatpush1.bf16.msra.mxu0 0
        %581 = vmatprep.subr.bf16.mxu0 0
        %582 = vmatpush1.bf16.msra.mxu0 0
        %583 = vmatprep.subr.bf16.mxu0 0
        %584 = vmatpush1.bf16.msra.mxu0 0
        %585 = vmatprep.subr.bf16.mxu0 0
        %586 = vmatpush1.bf16.msra.mxu0 0
        %587 = vmatprep.subr.bf16.mxu0 0
        %588 = vmatpush1.bf16.msra.mxu0 0
        %589 = vmatprep.subr.bf16.mxu0 0
        %590 = vmatpush1.bf16.msra.mxu0 0
        %591 = vmatprep.subr.bf16.mxu0 0
        %592 = vmatpush1.bf16.msra.mxu0 0
        %593 = vmatprep.mubr.bf16.mxu0 0
        %594 = vmatmul.mubr.bf16.gmra.mrb[0].mxu0 %v559
        %v595 = vpop.f32.mrb[0].mxu0
        %v596 = vadd.f32 0.0, %v595
        %v597 = vpop.f32.mrb[0].mxu0
        %v598 = vadd.f32 0.0, %v597
        %v599 = vpop.f32.mrb[0].mxu0
        %v600 = vpop.f32.mrb[0].mxu0
        %601 = vdwg.mxu0
        %v602 = vsub.f32 0.0, %v596
        %v603 = vmul.f32 %v602, 1.442695
        %v604 = vpow.pop %v603
        %v605 = vadd.f32 %v604, 1.0
        %v606 = vrcp.pop %v605
        %v607 = vmul.f32 %v596, %v606
        %v608 = vmul.f32 %v607, %v598
        %v609 = vpack.c.bf16 %v608, %v608
        %s610 = scalar_lea.vmem %s2, 128
        %v611 = vld [vmem:[%s610] sm:$0xf]
        %v612 = vld [vmem:[%s610 + $0x4] sm:$0xf]
        %v613 = vld [vmem:[%s610 + $0x8] sm:$0xf]
        %v614 = vld [vmem:[%s610 + $0xc] sm:$0xf]
        %v615 = vld [vmem:[%s610 + $0x10] sm:$0xf]
        %v616 = vld [vmem:[%s610 + $0x14] sm:$0xf]
        %v617 = vld [vmem:[%s610 + $0x18] sm:$0xf]
        %v618 = vld [vmem:[%s610 + $0x1c] sm:$0xf]
        %v619 = vld [vmem:[%s610 + $0x20] sm:$0xf]
        %v620 = vld [vmem:[%s610 + $0x24] sm:$0xf]
        %v621 = vld [vmem:[%s610 + $0x28] sm:$0xf]
        %v622 = vld [vmem:[%s610 + $0x2c] sm:$0xf]
        %v623 = vld [vmem:[%s610 + $0x30] sm:$0xf]
        %v624 = vld [vmem:[%s610 + $0x34] sm:$0xf]
        %v625 = vld [vmem:[%s610 + $0x38] sm:$0xf]
        %v626 = vld [vmem:[%s610 + $0x3c] sm:$0xf]
        %v643 = vunpack.c.l.b16 %v611
        %v644 = vunpack.c.l.b16 %v612
        %v645 = vunpack.c.l.b16 %v613
        %v646 = vunpack.c.l.b16 %v614
        %v647 = vunpack.c.l.b16 %v615
        %v648 = vunpack.c.l.b16 %v616
        %v649 = vunpack.c.l.b16 %v617
        %v650 = vunpack.c.l.b16 %v618
        %v651 = vunpack.c.l.b16 %v619
        %v652 = vunpack.c.l.b16 %v620
        %v653 = vunpack.c.l.b16 %v621
        %v654 = vunpack.c.l.b16 %v622
        %v655 = vunpack.c.l.b16 %v623
        %v656 = vunpack.c.l.b16 %v624
        %v657 = vunpack.c.l.b16 %v625
        %v658 = vunpack.c.l.b16 %v626
        %v659 = vpack.c.b16 %v644, %v643
        %v660 = vpack.c.b16 %v646, %v645
        %v661 = vpack.c.b16 %v648, %v647
        %v662 = vpack.c.b16 %v650, %v649
        %v663 = vpack.c.b16 %v652, %v651
        %v664 = vpack.c.b16 %v654, %v653
        %v665 = vpack.c.b16 %v656, %v655
        %v666 = vpack.c.b16 %v658, %v657
        %675 = vmatprep.subr.bf16.mxu0 0
        %676 = vmatpush1.bf16.msra.mxu0 %v659
        %677 = vmatprep.subr.bf16.mxu0 0
        %678 = vmatpush1.bf16.msra.mxu0 %v660
        %679 = vmatprep.subr.bf16.mxu0 0
        %680 = vmatpush1.bf16.msra.mxu0 %v661
        %681 = vmatprep.subr.bf16.mxu0 0
        %682 = vmatpush1.bf16.msra.mxu0 %v662
        %683 = vmatprep.subr.bf16.mxu0 0
        %684 = vmatpush1.bf16.msra.mxu0 %v663
        %685 = vmatprep.subr.bf16.mxu0 0
        %686 = vmatpush1.bf16.msra.mxu0 %v664
        %687 = vmatprep.subr.bf16.mxu0 0
        %688 = vmatpush1.bf16.msra.mxu0 %v665
        %689 = vmatprep.subr.bf16.mxu0 0
        %690 = vmatpush1.bf16.msra.mxu0 %v666
        %691 = vmatprep.subr.bf16.mxu0 0
        %692 = vmatpush1.bf16.msra.mxu0 0
        %693 = vmatprep.subr.bf16.mxu0 0
        %694 = vmatpush1.bf16.msra.mxu0 0
        %695 = vmatprep.subr.bf16.mxu0 0
        %696 = vmatpush1.bf16.msra.mxu0 0
        %697 = vmatprep.subr.bf16.mxu0 0
        %698 = vmatpush1.bf16.msra.mxu0 0
        %699 = vmatprep.subr.bf16.mxu0 0
        %700 = vmatpush1.bf16.msra.mxu0 0
        %701 = vmatprep.subr.bf16.mxu0 0
        %702 = vmatpush1.bf16.msra.mxu0 0
        %703 = vmatprep.subr.bf16.mxu0 0
        %704 = vmatpush1.bf16.msra.mxu0 0
        %705 = vmatprep.subr.bf16.mxu0 0
        %706 = vmatpush1.bf16.msra.mxu0 0
        %707 = vmatprep.mubr.bf16.mxu0 0
        %708 = vmatmul.mubr.bf16.gmra.mrb[0].mxu0 %v609
        %v709 = vpop.f32.mrb[0].mxu0
        %v710 = vadd.f32 0.0, %v709
        %v711 = vpop.f32.mrb[0].mxu0
        %v712 = vpop.f32.mrb[0].mxu0
        %v713 = vpop.f32.mrb[0].mxu0
        %714 = vdwg.mxu0
        %715 = vst.msk [vmem:[%s161] sm:$0xff] %vm192, %v710
        %s716 = sand.u32 %s93, 1
        %s717 = scalar_lea.sflag [#allocation3], %s716
        %s718 = sand.u32 %s93, 1
        %s719 = smul.addr %s718, 8
        %s720 = scalar_lea.vmem [#allocation2], %s719
        // Predicated region
        $region33: #{tpu_custom_call.1} parent=31 // pred_check
          %p721 = pneg %p103
        $region34: #{tpu_custom_call.1} parent=31 // pred_check_branch
          %723 = sbr.rel (%p721) target = $region36
        $region35: #{tpu_custom_call.1} parent=31 // pred_region
          %s725 = ssub.s32 128, 128
          %726 = vsyncadd %s717, %s725
          %s727 = smul.addr %s17, 128
          %s728 = scalar_lea.hbm %s3, %s727
          %s730 = sshll.u32 %s720, 4
          %s731 = int_to_ptr.vmem [resolvable:$true] %s730
          %733 = dma.vmem_to_hbm [thread:$0]  %s731, 128, %s728, %s717
        $region36: #{tpu_custom_call.1} parent=31 // pred_fallthru
          _
      $region32: #{tpu_custom_call.1} parent=5 // pred_fallthru
        _
      %p734 = scmp.le.s32.totalorder 2, %s12
      // Predicated region
      $region37: #{tpu_custom_call.1} parent=5 // pred_check
        %p735 = pneg %p734
      $region38: #{tpu_custom_call.1} parent=5 // pred_check_branch
        %737 = sbr.rel (%p735) target = $region40
      $region39: #{tpu_custom_call.1} parent=5 // pred_region
        %s738 = ssub.s32 %s12, 2
        // Predicated region
        $region41: #{tpu_custom_call.1} parent=39 // pred_check
          %p739 = pneg %p109
        $region42: #{tpu_custom_call.1} parent=39 // pred_check_branch
          %741 = sbr.rel (%p739) target = $region44
        $region43: #{tpu_custom_call.1} parent=39 // pred_region
          %s742 = sand.u32 %s94, 1
          %s743 = scalar_lea.sflag [#allocation3], %s742
          %s744 = sand.u32 %s94, 1
          %s745 = smul.addr %s744, 8
          %s746 = scalar_lea.vmem [#allocation2], %s745
          %747 = dma.done %s743, 128
        $region44: #{tpu_custom_call.1} parent=39 // pred_fallthru
          _
      $region40: #{tpu_custom_call.1} parent=5 // pred_fallthru
        _
    $region6: #{tpu_custom_call.1} parent=1 // loop_footer
      %s16 = sadd.s32 1, %s12
    $region7: #{tpu_custom_call.1} parent=1 // loop_footer_branch
      %11 = sbr.rel target = $region3
    $region8: #{tpu_custom_call.1} parent=1 // loop_exit
      _
    %748 = vsyncpa [#allocation3], 1
    %s749 = scalar_lea.sflag [#allocation3], 1
    %750 = vsyncpa %s749, 1

// kernel: tpu_custom_call.1
$region0: #{tpu_custom_call.1}
  #allocation0 [shape = 'u32[]', space=smem, size = 0x4, offset = 0x4, fixed_abs, tag = 'smem constant byte address 0x4 - core index']
  #allocation1 [shape = 'u32[144,128]{1,0:T(1,128)}', space=vmem, size = 0x12000, scoped, tag = 'internal scratch']
  %s0 = inlined_call_operand.vmem [shape: bf16[16,32], index: 0, kind: input, shape index: {}]
  %s1 = inlined_call_operand.vmem [shape: bf16[3,32,256], index: 1, kind: input, shape index: {}]
  %s2 = inlined_call_operand.vmem [shape: bf16[3,128,32], index: 2, kind: input, shape index: {}]
  %s3 = inlined_call_operand.hbm [shape: f32[16,32], index: 3, kind: output, shape index: {}]
  %s4 = sld [smem:[#allocation0]]
  $region45: #{tpu_custom_call.1} parent=0
    _
  %s6 = ssub.s32 1, %s4
  %s7 = scalar_select 0, %s6, %s4
  $region1: #{tpu_custom_call.1} parent=0
    #allocation2 [shape = 'u8[8192]{0}', space=vmem, size = 0x2000, scoped, tag = 'output window, operand 0']
    #allocation3 [shape = 's32[2]{0}', space=sflag, size = 0x8, scoped, tag = 'scoped memory for tpu_custom_call.1']
    %8 = vsyncpa [#allocation3], 0
    %s9 = scalar_lea.sflag [#allocation3], 1
    %10 = vsyncpa %s9, 0
    loop: start=0, step=1, limit=4
    $region2: #{tpu_custom_call.1} parent=1 // loop_pre_header
      _
    $region3: #{tpu_custom_call.1} parent=1 // loop_header
      %s12 = sphi 0, %s16
      %p13 = scmp.ge.s32.totalorder %s12, 4
      %s22 = sphi 0, %s24
      %s25 = sphi 0, %s22
      %s26 = sphi 0, %s25
      %s42 = sphi 0, %s26
      %s46 = sphi 0, %s46
      %s48 = sphi 0, %s46
      %s49 = sphi 0, %s48
      %s63 = sphi 0, %s49
      %s67 = sphi 0, %s67
      %s69 = sphi 0, %s67
      %s70 = sphi 0, %s69
      %s84 = sphi 0, %s70
      %s90 = sphi 0, %s92
      %s93 = sphi 0, %s90
      %s94 = sphi 0, %s93
      %s110 = sphi 0, %s94
    $region4: #{tpu_custom_call.1} parent=1 // loop_header_branch
      %15 = sbr.rel (%p13) target = $region8
    $region5: #{tpu_custom_call.1} parent=1 // loop_body
      %s17 = ssub.s32 %s12, 1
      %s18 = ssub.s32 %s12, 2
      %s19 = sadd.s32 %s12, 1
      %s20 = ssub.s32 %s12, %s19
      %p21 = scmp.eq.s32.totalorder %s20, 0
      %s23 = sadd.s32 %s22, 1
      %s24 = scalar_select %p21, %s22, %s23
      %p27 = pneg %p21
      %p28 = scmp.eq.s32.totalorder %s12, 1
      %p29 = por %p27, %p28
      %p30 = scmp.ne.s32.totalorder %s22, %s25
      %p31 = scmp.eq.s32.totalorder %s12, 0
      %p32 = por %p30, %p31
      %p33 = scmp.ne.s32.totalorder %s22, %s25
      %p34 = scmp.eq.s32.totalorder %s17, 1
      %p35 = por %p33, %p34
      %p36 = scmp.ne.s32.totalorder %s25, %s26
      %p37 = scmp.eq.s32.totalorder %s17, 0
      %p38 = por %p36, %p37
      %p39 = scmp.ne.s32.totalorder %s25, %s26
      %p40 = scmp.eq.s32.totalorder %s18, 1
      %p41 = por %p39, %p40
      %p43 = scmp.ne.s32.totalorder %s26, %s42
      %p44 = scmp.eq.s32.totalorder %s18, 0
      %p45 = por %p43, %p44
      %s47 = sadd.s32 %s46, 1
      %p50 = scmp.eq.s32.totalorder %s12, 1
      %p51 = scmp.ne.s32.totalorder %s46, %s48
      %p52 = scmp.eq.s32.totalorder %s12, 0
      %p53 = por %p51, %p52
      %p54 = scmp.ne.s32.totalorder %s46, %s48
      %p55 = scmp.eq.s32.totalorder %s17, 1
      %p56 = por %p54, %p55
      %p57 = scmp.ne.s32.totalorder %s48, %s49
      %p58 = scmp.eq.s32.totalorder %s17, 0
      %p59 = por %p57, %p58
      %p60 = scmp.ne.s32.totalorder %s48, %s49
      %p61 = scmp.eq.s32.totalorder %s18, 1
      %p62 = por %p60, %p61
      %p64 = scmp.ne.s32.totalorder %s49, %s63
      %p65 = scmp.eq.s32.totalorder %s18, 0
      %p66 = por %p64, %p65
      %s68 = sadd.s32 %s67, 1
      %p71 = scmp.eq.s32.totalorder %s12, 1
      %p72 = scmp.ne.s32.totalorder %s67, %s69
      %p73 = scmp.eq.s32.totalorder %s12, 0
      %p74 = por %p72, %p73
      %p75 = scmp.ne.s32.totalorder %s67, %s69
      %p76 = scmp.eq.s32.totalorder %s17, 1
      %p77 = por %p75, %p76
      %p78 = scmp.ne.s32.totalorder %s69, %s70
      %p79 = scmp.eq.s32.totalorder %s17, 0
      %p80 = por %p78, %p79
      %p81 = scmp.ne.s32.totalorder %s69, %s70
      %p82 = scmp.eq.s32.totalorder %s18, 1
      %p83 = por %p81, %p82
      %p85 = scmp.ne.s32.totalorder %s70, %s84
      %p86 = scmp.eq.s32.totalorder %s18, 0
      %p87 = por %p85, %p86
      %s88 = ssub.s32 %s12, %s19
      %p89 = scmp.eq.s32.totalorder %s88, 0
      %s91 = sadd.s32 %s90, 1
      %s92 = scalar_select %p89, %s90, %s91
      %p95 = pneg %p89
      %p96 = scmp.eq.s32.totalorder %s12, 1
      %p97 = por %p95, %p96
      %p98 = scmp.ne.s32.totalorder %s90, %s93
      %p99 = scmp.eq.s32.totalorder %s12, 0
      %p100 = por %p98, %p99
      %p101 = scmp.ne.s32.totalorder %s90, %s93
      %p102 = scmp.eq.s32.totalorder %s17, 1
      %p103 = por %p101, %p102
      %p104 = scmp.ne.s32.totalorder %s93, %s94
      %p105 = scmp.eq.s32.totalorder %s17, 0
      %p106 = por %p104, %p105
      %p107 = scmp.ne.s32.totalorder %s93, %s94
      %p108 = scmp.eq.s32.totalorder %s18, 1
      %p109 = por %p107, %p108
      %p111 = scmp.ne.s32.totalorder %s94, %s110
      %p112 = scmp.eq.s32.totalorder %s18, 0
      %p113 = por %p111, %p112
      %p114 = scmp.le.s32.totalorder 1, %s12
      %p115 = scmp.lt.s32.totalorder %s12, 3
      %p116 = pnand %p114, %p115
      %p117 = pneg %p116
      // Predicated region
      $region9: #{tpu_custom_call.1} parent=5 // pred_check
        _
      $region10: #{tpu_custom_call.1} parent=5 // pred_check_branch
        %119 = sbr.rel (%p116) target = $region12
      $region11: #{tpu_custom_call.1} parent=5 // pred_region
        %s120 = ssub.s32 %s12, 1
        // Predicated region
        $region13: #{tpu_custom_call.1} parent=11 // pred_check
          %p121 = pneg %p59
        $region14: #{tpu_custom_call.1} parent=11 // pred_check_branch
          %123 = sbr.rel (%p121) target = $region16
        $region15: #{tpu_custom_call.1} parent=11 // pred_region
          _
        $region16: #{tpu_custom_call.1} parent=11 // pred_fallthru
          _
        // Predicated region
        $region17: #{tpu_custom_call.1} parent=11 // pred_check
          %p124 = pneg %p80
        $region18: #{tpu_custom_call.1} parent=11 // pred_check_branch
          %126 = sbr.rel (%p124) target = $region20
        $region19: #{tpu_custom_call.1} parent=11 // pred_region
          _
        $region20: #{tpu_custom_call.1} parent=11 // pred_fallthru
          _
      $region12: #{tpu_custom_call.1} parent=5 // pred_fallthru
        _
      %p127 = scmp.lt.s32.totalorder %s12, 2
      // Predicated region
      $region21: #{tpu_custom_call.1} parent=5 // pred_check
        %p128 = pneg %p127
      $region22: #{tpu_custom_call.1} parent=5 // pred_check_branch
        %130 = sbr.rel (%p128) target = $region24
      $region23: #{tpu_custom_call.1} parent=5 // pred_region
        // Predicated region
        $region25: #{tpu_custom_call.1} parent=23 // pred_check
          %p131 = pneg %p32
        $region26: #{tpu_custom_call.1} parent=23 // pred_check_branch
          %133 = sbr.rel (%p131) target = $region28
        $region27: #{tpu_custom_call.1} parent=23 // pred_region
          %p134 = scmp.lt.s32.totalorder %s12, 1
          %s135 = scalar_select %p134, %s12, 1
          %s136 = smul.addr %s135, 4
          %s137 = scalar_lea.vmem %s0, %s136
        $region28: #{tpu_custom_call.1} parent=23 // pred_fallthru
          _
      $region24: #{tpu_custom_call.1} parent=5 // pred_fallthru
        _
      %p138 = scmp.le.s32.totalorder 1, %s12
      %p139 = scmp.lt.s32.totalorder %s12, 3
      %p140 = pnand %p138, %p139
      %p141 = pneg %p140
      // Predicated region
      $region29: #{tpu_custom_call.1} parent=5 // pred_check
        _
      $region30: #{tpu_custom_call.1} parent=5 // pred_check_branch
        %143 = sbr.rel (%p140) target = $region32
      $region31: #{tpu_custom_call.1} parent=5 // pred_region
        %s144 = ssub.s32 %s12, 1
        %p145 = scmp.lt.s32.totalorder %s17, 1
        %s146 = scalar_select %p145, %s17, 1
        %s147 = smul.addr %s146, 4
        %s148 = scalar_lea.vmem %s0, %s147
        %p149 = pneg %p38
        %p150 = pneg %p35
        %p151 = pneg %p59
        %p152 = pneg %p56
        %p153 = pneg %p80
        %p154 = pneg %p77
        %p155 = pneg %p106
        %p156 = pneg %p103
        %s157 = sand.u32 %s93, 1
        %s158 = scalar_lea.sflag [#allocation3], %s157
        %s159 = sand.u32 %s93, 1
        %s160 = smul.addr %s159, 8
        %s161 = scalar_lea.vmem [#allocation2], %s160
        %p162 = scmp.lt.s32.totalorder %s17, 1
        %s163 = scalar_select %p162, %s17, 1
        %s164 = smul.addr %s163, 4
        %s165 = scalar_lea.vmem %s0, %s164
        %v167 = vld [vmem:[%s165] sm:$0xf]
        %v168 = vld [vmem:[%s1] sm:$0xff]
        %v169 = vld [vmem:[%s1 + $0x8] sm:$0xff]
        %v170 = vld [vmem:[%s1 + $0x10] sm:$0xff]
        %v171 = vld [vmem:[%s1 + $0x18] sm:$0xff]
        %v176 = vunpack.c.l.b16 %v168
        %v177 = vunpack.c.h.b16 %v168
        %v178 = vunpack.c.l.b16 %v169
        %v179 = vunpack.c.h.b16 %v169
        %v180 = vunpack.c.l.b16 %v170
        %v181 = vunpack.c.h.b16 %v170
        %v182 = vunpack.c.l.b16 %v171
        %v183 = vunpack.c.h.b16 %v171
        %v184 = vpack.c.b16 %v178, %v176
        %v185 = vpack.c.b16 %v179, %v177
        %v186 = vpack.c.b16 %v182, %v180
        %v187 = vpack.c.b16 %v183, %v181
        %vm192 = vcmask 261120
        %v194 = vsel %vm192, %v167, 0
        %196 = vmatprep.subr.bf16.mxu0 %v185
        %197 = vmatpush1.bf16.msra.mxu0 %v184
        %198 = vmatprep.subr.bf16.mxu0 %v187
        %199 = vmatpush1.bf16.msra.mxu0 %v186
        %200 = vmatprep.subr.bf16.mxu0 0
        %201 = vmatpush1.bf16.msra.mxu0 0
        %202 = vmatprep.subr.bf16.mxu0 0
        %203 = vmatpush1.bf16.msra.mxu0 0
        %204 = vmatprep.subr.bf16.mxu0 0
        %205 = vmatpush1.bf16.msra.mxu0 0
        %206 = vmatprep.subr.bf16.mxu0 0
        %207 = vmatpush1.bf16.msra.mxu0 0
        %208 = vmatprep.subr.bf16.mxu0 0
        %209 = vmatpush1.bf16.msra.mxu0 0
        %210 = vmatprep.subr.bf16.mxu0 0
        %211 = vmatpush1.bf16.msra.mxu0 0
        %212 = vmatprep.subr.bf16.mxu0 0
        %213 = vmatpush1.bf16.msra.mxu0 0
        %214 = vmatprep.subr.bf16.mxu0 0
        %215 = vmatpush1.bf16.msra.mxu0 0
        %216 = vmatprep.subr.bf16.mxu0 0
        %217 = vmatpush1.bf16.msra.mxu0 0
        %218 = vmatprep.subr.bf16.mxu0 0
        %219 = vmatpush1.bf16.msra.mxu0 0
        %220 = vmatprep.subr.bf16.mxu0 0
        %221 = vmatpush1.bf16.msra.mxu0 0
        %222 = vmatprep.subr.bf16.mxu0 0
        %223 = vmatpush1.bf16.msra.mxu0 0
        %224 = vmatprep.subr.bf16.mxu0 0
        %225 = vmatpush1.bf16.msra.mxu0 0
        %226 = vmatprep.subr.bf16.mxu0 0
        %227 = vmatpush1.bf16.msra.mxu0 0
        %228 = vmatprep.mubr.bf16.mxu0 0
        %229 = vmatmul.mubr.bf16.gmra.mrb[0].mxu0 %v194
        %v230 = vpop.f32.mrb[0].mxu0
        %v231 = vadd.f32 0.0, %v230
        %v232 = vpop.f32.mrb[0].mxu0
        %v233 = vadd.f32 0.0, %v232
        %v234 = vpop.f32.mrb[0].mxu0
        %v235 = vpop.f32.mrb[0].mxu0
        %236 = vdwg.mxu0
        %v237 = vsub.f32 0.0, %v231
        %v238 = vmul.f32 %v237, 1.442695
        %v239 = vpow.pop %v238
        %v240 = vadd.f32 %v239, 1.0
        %v241 = vrcp.pop %v240
        %v242 = vmul.f32 %v231, %v241
        %v243 = vmul.f32 %v242, %v233
        %v244 = vpack.c.bf16 %v243, %v243
        %v245 = vld [vmem:[%s2] sm:$0xf]
        %v246 = vld [vmem:[%s2 + $0x4] sm:$0xf]
        %v247 = vld [vmem:[%s2 + $0x8] sm:$0xf]
        %v248 = vld [vmem:[%s2 + $0xc] sm:$0xf]
        %v249 = vld [vmem:[%s2 + $0x10] sm:$0xf]
        %v250 = vld [vmem:[%s2 + $0x14] sm:$0xf]
        %v251 = vld [vmem:[%s2 + $0x18] sm:$0xf]
        %v252 = vld [vmem:[%s2 + $0x1c] sm:$0xf]
        %v253 = vld [vmem:[%s2 + $0x20] sm:$0xf]
        %v254 = vld [vmem:[%s2 + $0x24] sm:$0xf]
        %v255 = vld [vmem:[%s2 + $0x28] sm:$0xf]
        %v256 = vld [vmem:[%s2 + $0x2c] sm:$0xf]
        %v257 = vld [vmem:[%s2 + $0x30] sm:$0xf]
        %v258 = vld [vmem:[%s2 + $0x34] sm:$0xf]
        %v259 = vld [vmem:[%s2 + $0x38] sm:$0xf]
        %v260 = vld [vmem:[%s2 + $0x3c] sm:$0xf]
        %v277 = vunpack.c.l.b16 %v245
        %v278 = vunpack.c.l.b16 %v246
        %v279 = vunpack.c.l.b16 %v247
        %v280 = vunpack.c.l.b16 %v248
        %v281 = vunpack.c.l.b16 %v249
        %v282 = vunpack.c.l.b16 %v250
        %v283 = vunpack.c.l.b16 %v251
        %v284 = vunpack.c.l.b16 %v252
        %v285 = vunpack.c.l.b16 %v253
        %v286 = vunpack.c.l.b16 %v254
        %v287 = vunpack.c.l.b16 %v255
        %v288 = vunpack.c.l.b16 %v256
        %v289 = vunpack.c.l.b16 %v257
        %v290 = vunpack.c.l.b16 %v258
        %v291 = vunpack.c.l.b16 %v259
        %v292 = vunpack.c.l.b16 %v260
        %v293 = vpack.c.b16 %v278, %v277
        %v294 = vpack.c.b16 %v280, %v279
        %v295 = vpack.c.b16 %v282, %v281
        %v296 = vpack.c.b16 %v284, %v283
        %v297 = vpack.c.b16 %v286, %v285
        %v298 = vpack.c.b16 %v288, %v287
        %v299 = vpack.c.b16 %v290, %v289
        %v300 = vpack.c.b16 %v292, %v291
        %309 = vmatprep.subr.bf16.mxu0 0
        %310 = vmatpush1.bf16.msra.mxu0 %v293
        %311 = vmatprep.subr.bf16.mxu0 0
        %312 = vmatpush1.bf16.msra.mxu0 %v294
        %313 = vmatprep.subr.bf16.mxu0 0
        %314 = vmatpush1.bf16.msra.mxu0 %v295
        %315 = vmatprep.subr.bf16.mxu0 0
        %316 = vmatpush1.bf16.msra.mxu0 %v296
        %317 = vmatprep.subr.bf16.mxu0 0
        %318 = vmatpush1.bf16.msra.mxu0 %v297
        %319 = vmatprep.subr.bf16.mxu0 0
        %320 = vmatpush1.bf16.msra.mxu0 %v298
        %321 = vmatprep.subr.bf16.mxu0 0
        %322 = vmatpush1.bf16.msra.mxu0 %v299
        %323 = vmatprep.subr.bf16.mxu0 0
        %324 = vmatpush1.bf16.msra.mxu0 %v300
        %325 = vmatprep.subr.bf16.mxu0 0
        %326 = vmatpush1.bf16.msra.mxu0 0
        %327 = vmatprep.subr.bf16.mxu0 0
        %328 = vmatpush1.bf16.msra.mxu0 0
        %329 = vmatprep.subr.bf16.mxu0 0
        %330 = vmatpush1.bf16.msra.mxu0 0
        %331 = vmatprep.subr.bf16.mxu0 0
        %332 = vmatpush1.bf16.msra.mxu0 0
        %333 = vmatprep.subr.bf16.mxu0 0
        %334 = vmatpush1.bf16.msra.mxu0 0
        %335 = vmatprep.subr.bf16.mxu0 0
        %336 = vmatpush1.bf16.msra.mxu0 0
        %337 = vmatprep.subr.bf16.mxu0 0
        %338 = vmatpush1.bf16.msra.mxu0 0
        %339 = vmatprep.subr.bf16.mxu0 0
        %340 = vmatpush1.bf16.msra.mxu0 0
        %341 = vmatprep.mubr.bf16.mxu0 0
        %342 = vmatmul.mubr.bf16.gmra.mrb[0].mxu0 %v244
        %v343 = vpop.f32.mrb[0].mxu0
        %v344 = vadd.f32 0.0, %v343
        %v345 = vpop.f32.mrb[0].mxu0
        %v346 = vpop.f32.mrb[0].mxu0
        %v347 = vpop.f32.mrb[0].mxu0
        %348 = vdwg.mxu0
        %v349 = vpack.c.bf16 %v344, %v344
        %s350 = scalar_lea.vmem %s1, 32
        %v351 = vld [vmem:[%s350] sm:$0xff]
        %v352 = vld [vmem:[%s350 + $0x8] sm:$0xff]
        %v353 = vld [vmem:[%s350 + $0x10] sm:$0xff]
        %v354 = vld [vmem:[%s350 + $0x18] sm:$0xff]
        %v359 = vunpack.c.l.b16 %v351
        %v360 = vunpack.c.h.b16 %v351
        %v361 = vunpack.c.l.b16 %v352
        %v362 = vunpack.c.h.b16 %v352
        %v363 = vunpack.c.l.b16 %v353
        %v364 = vunpack.c.h.b16 %v353
        %v365 = vunpack.c.l.b16 %v354
        %v366 = vunpack.c.h.b16 %v354
        %v367 = vpack.c.b16 %v361, %v359
        %v368 = vpack.c.b16 %v362, %v360
        %v369 = vpack.c.b16 %v365, %v363
        %v370 = vpack.c.b16 %v366, %v364
        %v376 = vsel %vm192, %v349, 0
        %378 = vmatprep.subr.bf16.mxu0 %v368
        %379 = vmatpush1.bf16.msra.mxu0 %v367
        %380 = vmatprep.subr.bf16.mxu0 %v370
        %381 = vmatpush1.bf16.msra.mxu0 %v369
        %382 = vmatprep.subr.bf16.mxu0 0
        %383 = vmatpush1.bf16.msra.mxu0 0
        %384 = vmatprep.subr.bf16.mxu0 0
        %385 = vmatpush1.bf16.msra.mxu0 0
        %386 = vmatprep.subr.bf16.mxu0 0
        %387 = vmatpush1.bf16.msra.mxu0 0
        %388 = vmatprep.subr.bf16.mxu0 0
        %389 = vmatpush1.bf16.msra.mxu0 0
        %390 = vmatprep.subr.bf16.mxu0 0
        %391 = vmatpush1.bf16.msra.mxu0 0
        %392 = vmatprep.subr.bf16.mxu0 0
        %393 = vmatpush1.bf16.msra.mxu0 0
        %394 = vmatprep.subr.bf16.mxu0 0
        %395 = vmatpush1.bf16.msra.mxu0 0
        %396 = vmatprep.subr.bf16.mxu0 0
        %397 = vmatpush1.bf16.msra.mxu0 0
        %398 = vmatprep.subr.bf16.mxu0 0
        %399 = vmatpush1.bf16.msra.mxu0 0
        %400 = vmatprep.subr.bf16.mxu0 0
        %401 = vmatpush1.bf16.msra.mxu0 0
        %402 = vmatprep.subr.bf16.mxu0 0
        %403 = vmatpush1.bf16.msra.mxu0 0
        %404 = vmatprep.subr.bf16.mxu0 0
        %405 = vmatpush1.bf16.msra.mxu0 0
        %406 = vmatprep.subr.bf16.mxu0 0
        %407 = vmatpush1.bf16.msra.mxu0 0
        %408 = vmatprep.subr.bf16.mxu0 0
        %409 = vmatpush1.bf16.msra.mxu0 0
        %410 = vmatprep.mubr.bf16.mxu0 0
        %411 = vmatmul.mubr.bf16.gmra.mrb[0].mxu0 %v376
        %v412 = vpop.f32.mrb[0].mxu0
        %v413 = vadd.f32 0.0, %v412
        %v414 = vpop.f32.mrb[0].mxu0
        %v415 = vadd.f32 0.0, %v414
        %v416 = vpop.f32.mrb[0].mxu0
        %v417 = vpop.f32.mrb[0].mxu0
        %418 = vdwg.mxu0
        %v419 = vsub.f32 0.0, %v413
        %v420 = vmul.f32 %v419, 1.442695
        %v421 = vpow.pop %v420
        %v422 = vadd.f32 %v421, 1.0
        %v423 = vrcp.pop %v422
        %v424 = vmul.f32 %v413, %v423
        %v425 = vmul.f32 %v424, %v415
        %v426 = vpack.c.bf16 %v425, %v425
        %s427 = scalar_lea.vmem %s2, 64
        %v428 = vld [vmem:[%s427] sm:$0xf]
        %v429 = vld [vmem:[%s427 + $0x4] sm:$0xf]
        %v430 = vld [vmem:[%s427 + $0x8] sm:$0xf]
        %v431 = vld [vmem:[%s427 + $0xc] sm:$0xf]
        %v432 = vld [vmem:[%s427 + $0x10] sm:$0xf]
        %v433 = vld [vmem:[%s427 + $0x14] sm:$0xf]
        %v434 = vld [vmem:[%s427 + $0x18] sm:$0xf]
        %v435 = vld [vmem:[%s427 + $0x1c] sm:$0xf]
        %v436 = vld [vmem:[%s427 + $0x20] sm:$0xf]
        %v437 = vld [vmem:[%s427 + $0x24] sm:$0xf]
        %v438 = vld [vmem:[%s427 + $0x28] sm:$0xf]
        %v439 = vld [vmem:[%s427 + $0x2c] sm:$0xf]
        %v440 = vld [vmem:[%s427 + $0x30] sm:$0xf]
        %v441 = vld [vmem:[%s427 + $0x34] sm:$0xf]
        %v442 = vld [vmem:[%s427 + $0x38] sm:$0xf]
        %v443 = vld [vmem:[%s427 + $0x3c] sm:$0xf]
        %v460 = vunpack.c.l.b16 %v428
        %v461 = vunpack.c.l.b16 %v429
        %v462 = vunpack.c.l.b16 %v430
        %v463 = vunpack.c.l.b16 %v431
        %v464 = vunpack.c.l.b16 %v432
        %v465 = vunpack.c.l.b16 %v433
        %v466 = vunpack.c.l.b16 %v434
        %v467 = vunpack.c.l.b16 %v435
        %v468 = vunpack.c.l.b16 %v436
        %v469 = vunpack.c.l.b16 %v437
        %v470 = vunpack.c.l.b16 %v438
        %v471 = vunpack.c.l.b16 %v439
        %v472 = vunpack.c.l.b16 %v440
        %v473 = vunpack.c.l.b16 %v441
        %v474 = vunpack.c.l.b16 %v442
        %v475 = vunpack.c.l.b16 %v443
        %v476 = vpack.c.b16 %v461, %v460
        %v477 = vpack.c.b16 %v463, %v462
        %v478 = vpack.c.b16 %v465, %v464
        %v479 = vpack.c.b16 %v467, %v466
        %v480 = vpack.c.b16 %v469, %v468
        %v481 = vpack.c.b16 %v471, %v470
        %v482 = vpack.c.b16 %v473, %v472
        %v483 = vpack.c.b16 %v475, %v474
        %492 = vmatprep.subr.bf16.mxu0 0
        %493 = vmatpush1.bf16.msra.mxu0 %v476
        %494 = vmatprep.subr.bf16.mxu0 0
        %495 = vmatpush1.bf16.msra.mxu0 %v477
        %496 = vmatprep.subr.bf16.mxu0 0
        %497 = vmatpush1.bf16.msra.mxu0 %v478
        %498 = vmatprep.subr.bf16.mxu0 0
        %499 = vmatpush1.bf16.msra.mxu0 %v479
        %500 = vmatprep.subr.bf16.mxu0 0
        %501 = vmatpush1.bf16.msra.mxu0 %v480
        %502 = vmatprep.subr.bf16.mxu0 0
        %503 = vmatpush1.bf16.msra.mxu0 %v481
        %504 = vmatprep.subr.bf16.mxu0 0
        %505 = vmatpush1.bf16.msra.mxu0 %v482
        %506 = vmatprep.subr.bf16.mxu0 0
        %507 = vmatpush1.bf16.msra.mxu0 %v483
        %508 = vmatprep.subr.bf16.mxu0 0
        %509 = vmatpush1.bf16.msra.mxu0 0
        %510 = vmatprep.subr.bf16.mxu0 0
        %511 = vmatpush1.bf16.msra.mxu0 0
        %512 = vmatprep.subr.bf16.mxu0 0
        %513 = vmatpush1.bf16.msra.mxu0 0
        %514 = vmatprep.subr.bf16.mxu0 0
        %515 = vmatpush1.bf16.msra.mxu0 0
        %516 = vmatprep.subr.bf16.mxu0 0
        %517 = vmatpush1.bf16.msra.mxu0 0
        %518 = vmatprep.subr.bf16.mxu0 0
        %519 = vmatpush1.bf16.msra.mxu0 0
        %520 = vmatprep.subr.bf16.mxu0 0
        %521 = vmatpush1.bf16.msra.mxu0 0
        %522 = vmatprep.subr.bf16.mxu0 0
        %523 = vmatpush1.bf16.msra.mxu0 0
        %524 = vmatprep.mubr.bf16.mxu0 0
        %525 = vmatmul.mubr.bf16.gmra.mrb[0].mxu0 %v426
        %v526 = vpop.f32.mrb[0].mxu0
        %v527 = vadd.f32 0.0, %v526
        %v528 = vpop.f32.mrb[0].mxu0
        %v529 = vpop.f32.mrb[0].mxu0
        %v530 = vpop.f32.mrb[0].mxu0
        %531 = vdwg.mxu0
        %v532 = vpack.c.bf16 %v527, %v527
        %s533 = scalar_lea.vmem %s1, 64
        %v534 = vld [vmem:[%s533] sm:$0xff]
        %v535 = vld [vmem:[%s533 + $0x8] sm:$0xff]
        %v536 = vld [vmem:[%s533 + $0x10] sm:$0xff]
        %v537 = vld [vmem:[%s533 + $0x18] sm:$0xff]
        %v542 = vunpack.c.l.b16 %v534
        %v543 = vunpack.c.h.b16 %v534
        %v544 = vunpack.c.l.b16 %v535
        %v545 = vunpack.c.h.b16 %v535
        %v546 = vunpack.c.l.b16 %v536
        %v547 = vunpack.c.h.b16 %v536
        %v548 = vunpack.c.l.b16 %v537
        %v549 = vunpack.c.h.b16 %v537
        %v550 = vpack.c.b16 %v544, %v542
        %v551 = vpack.c.b16 %v545, %v543
        %v552 = vpack.c.b16 %v548, %v546
        %v553 = vpack.c.b16 %v549, %v547
        %v559 = vsel %vm192, %v532, 0
        %561 = vmatprep.subr.bf16.mxu0 %v551
        %562 = vmatpush1.bf16.msra.mxu0 %v550
        %563 = vmatprep.subr.bf16.mxu0 %v553
        %564 = vmatpush1.bf16.msra.mxu0 %v552
        %565 = vmatprep.subr.bf16.mxu0 0
        %566 = vmatpush1.bf16.msra.mxu0 0
        %567 = vmatprep.subr.bf16.mxu0 0
        %568 = vmatpush1.bf16.msra.mxu0 0
        %569 = vmatprep.subr.bf16.mxu0 0
        %570 = vmatpush1.bf16.msra.mxu0 0
        %571 = vmatprep.subr.bf16.mxu0 0
        %572 = vmatpush1.bf16.msra.mxu0 0
        %573 = vmatprep.subr.bf16.mxu0 0
        %574 = vmatpush1.bf16.msra.mxu0 0
        %575 = vmatprep.subr.bf16.mxu0 0
        %576 = vmatpush1.bf16.msra.mxu0 0
        %577 = vmatprep.subr.bf16.mxu0 0
        %578 = vmatpush1.bf16.msra.mxu0 0
        %579 = vmatprep.subr.bf16.mxu0 0
        %580 = vmatpush1.bf16.msra.mxu0 0
        %581 = vmatprep.subr.bf16.mxu0 0
        %582 = vmatpush1.bf16.msra.mxu0 0
        %583 = vmatprep.subr.bf16.mxu0 0
        %584 = vmatpush1.bf16.msra.mxu0 0
        %585 = vmatprep.subr.bf16.mxu0 0
        %586 = vmatpush1.bf16.msra.mxu0 0
        %587 = vmatprep.subr.bf16.mxu0 0
        %588 = vmatpush1.bf16.msra.mxu0 0
        %589 = vmatprep.subr.bf16.mxu0 0
        %590 = vmatpush1.bf16.msra.mxu0 0
        %591 = vmatprep.subr.bf16.mxu0 0
        %592 = vmatpush1.bf16.msra.mxu0 0
        %593 = vmatprep.mubr.bf16.mxu0 0
        %594 = vmatmul.mubr.bf16.gmra.mrb[0].mxu0 %v559
        %v595 = vpop.f32.mrb[0].mxu0
        %v596 = vadd.f32 0.0, %v595
        %v597 = vpop.f32.mrb[0].mxu0
        %v598 = vadd.f32 0.0, %v597
        %v599 = vpop.f32.mrb[0].mxu0
        %v600 = vpop.f32.mrb[0].mxu0
        %601 = vdwg.mxu0
        %v602 = vsub.f32 0.0, %v596
        %v603 = vmul.f32 %v602, 1.442695
        %v604 = vpow.pop %v603
        %v605 = vadd.f32 %v604, 1.0
        %v606 = vrcp.pop %v605
        %v607 = vmul.f32 %v596, %v606
        %v608 = vmul.f32 %v607, %v598
        %v609 = vpack.c.bf16 %v608, %v608
        %s610 = scalar_lea.vmem %s2, 128
        %v611 = vld [vmem:[%s610] sm:$0xf]
        %v612 = vld [vmem:[%s610 + $0x4] sm:$0xf]
        %v613 = vld [vmem:[%s610 + $0x8] sm:$0xf]
        %v614 = vld [vmem:[%s610 + $0xc] sm:$0xf]
        %v615 = vld [vmem:[%s610 + $0x10] sm:$0xf]
        %v616 = vld [vmem:[%s610 + $0x14] sm:$0xf]
        %v617 = vld [vmem:[%s610 + $0x18] sm:$0xf]
        %v618 = vld [vmem:[%s610 + $0x1c] sm:$0xf]
        %v619 = vld [vmem:[%s610 + $0x20] sm:$0xf]
        %v620 = vld [vmem:[%s610 + $0x24] sm:$0xf]
        %v621 = vld [vmem:[%s610 + $0x28] sm:$0xf]
        %v622 = vld [vmem:[%s610 + $0x2c] sm:$0xf]
        %v623 = vld [vmem:[%s610 + $0x30] sm:$0xf]
        %v624 = vld [vmem:[%s610 + $0x34] sm:$0xf]
        %v625 = vld [vmem:[%s610 + $0x38] sm:$0xf]
        %v626 = vld [vmem:[%s610 + $0x3c] sm:$0xf]
        %v643 = vunpack.c.l.b16 %v611
        %v644 = vunpack.c.l.b16 %v612
        %v645 = vunpack.c.l.b16 %v613
        %v646 = vunpack.c.l.b16 %v614
        %v647 = vunpack.c.l.b16 %v615
        %v648 = vunpack.c.l.b16 %v616
        %v649 = vunpack.c.l.b16 %v617
        %v650 = vunpack.c.l.b16 %v618
        %v651 = vunpack.c.l.b16 %v619
        %v652 = vunpack.c.l.b16 %v620
        %v653 = vunpack.c.l.b16 %v621
        %v654 = vunpack.c.l.b16 %v622
        %v655 = vunpack.c.l.b16 %v623
        %v656 = vunpack.c.l.b16 %v624
        %v657 = vunpack.c.l.b16 %v625
        %v658 = vunpack.c.l.b16 %v626
        %v659 = vpack.c.b16 %v644, %v643
        %v660 = vpack.c.b16 %v646, %v645
        %v661 = vpack.c.b16 %v648, %v647
        %v662 = vpack.c.b16 %v650, %v649
        %v663 = vpack.c.b16 %v652, %v651
        %v664 = vpack.c.b16 %v654, %v653
        %v665 = vpack.c.b16 %v656, %v655
        %v666 = vpack.c.b16 %v658, %v657
        %675 = vmatprep.subr.bf16.mxu0 0
        %676 = vmatpush1.bf16.msra.mxu0 %v659
        %677 = vmatprep.subr.bf16.mxu0 0
        %678 = vmatpush1.bf16.msra.mxu0 %v660
        %679 = vmatprep.subr.bf16.mxu0 0
        %680 = vmatpush1.bf16.msra.mxu0 %v661
        %681 = vmatprep.subr.bf16.mxu0 0
        %682 = vmatpush1.bf16.msra.mxu0 %v662
        %683 = vmatprep.subr.bf16.mxu0 0
        %684 = vmatpush1.bf16.msra.mxu0 %v663
        %685 = vmatprep.subr.bf16.mxu0 0
        %686 = vmatpush1.bf16.msra.mxu0 %v664
        %687 = vmatprep.subr.bf16.mxu0 0
        %688 = vmatpush1.bf16.msra.mxu0 %v665
        %689 = vmatprep.subr.bf16.mxu0 0
        %690 = vmatpush1.bf16.msra.mxu0 %v666
        %691 = vmatprep.subr.bf16.mxu0 0
        %692 = vmatpush1.bf16.msra.mxu0 0
        %693 = vmatprep.subr.bf16.mxu0 0
        %694 = vmatpush1.bf16.msra.mxu0 0
        %695 = vmatprep.subr.bf16.mxu0 0
        %696 = vmatpush1.bf16.msra.mxu0 0
        %697 = vmatprep.subr.bf16.mxu0 0
        %698 = vmatpush1.bf16.msra.mxu0 0
        %699 = vmatprep.subr.bf16.mxu0 0
        %700 = vmatpush1.bf16.msra.mxu0 0
        %701 = vmatprep.subr.bf16.mxu0 0
        %702 = vmatpush1.bf16.msra.mxu0 0
        %703 = vmatprep.subr.bf16.mxu0 0
        %704 = vmatpush1.bf16.msra.mxu0 0
        %705 = vmatprep.subr.bf16.mxu0 0
        %706 = vmatpush1.bf16.msra.mxu0 0
        %707 = vmatprep.mubr.bf16.mxu0 0
        %708 = vmatmul.mubr.bf16.gmra.mrb[0].mxu0 %v609
        %v709 = vpop.f32.mrb[0].mxu0
        %v710 = vadd.f32 0.0, %v709
        %v711 = vpop.f32.mrb[0].mxu0
        %v712 = vpop.f32.mrb[0].mxu0
        %v713 = vpop.f32.mrb[0].mxu0
        %714 = vdwg.mxu0
        %715 = vst.msk [vmem:[%s161] sm:$0xff] %vm192, %v710
        %s716 = sand.u32 %s93, 1
        %s717 = scalar_lea.sflag [#allocation3], %s716
        %s718 = sand.u32 %s93, 1
        %s719 = smul.addr %s718, 8
        %s720 = scalar_lea.vmem [#allocation2], %s719
        // Predicated region
        $region33: #{tpu_custom_call.1} parent=31 // pred_check
          %p721 = pneg %p103
        $region34: #{tpu_custom_call.1} parent=31 // pred_check_branch
          %723 = sbr.rel (%p721) target = $region36
        $region35: #{tpu_custom_call.1} parent=31 // pred_region
          %s725 = ssub.s32 128, 128
          %726 = vsyncadd %s717, %s725
          %s727 = smul.addr %s17, 128
          %s728 = scalar_lea.hbm %s3, %s727
          %s730 = sshll.u32 %s720, 4
          %s731 = int_to_ptr.vmem [resolvable:$true] %s730
          %733 = dma.vmem_to_hbm [thread:$0]  %s731, 128, %s728, %s717
        $region36: #{tpu_custom_call.1} parent=31 // pred_fallthru
          _
      $region32: #{tpu_custom_call.1} parent=5 // pred_fallthru
        _
      %p734 = scmp.le.s32.totalorder 2, %s12
      // Predicated region
      $region37: #{tpu_custom_call.1} parent=5 // pred_check
        %p735 = pneg %p734
      $region38: #{tpu_custom_call.1} parent=5 // pred_check_branch
        %737 = sbr.rel (%p735) target = $region40
      $region39: #{tpu_custom_call.1} parent=5 // pred_region
        %s738 = ssub.s32 %s12, 2
        // Predicated region
        $region41: #{tpu_custom_call.1} parent=39 // pred_check
          %p739 = pneg %p109
        $region42: #{tpu_custom_call.1} parent=39 // pred_check_branch
          %741 = sbr.rel (%p739) target = $region44
        $region43: #{tpu_custom_call.1} parent=39 // pred_region
          %s742 = sand.u32 %s94, 1
          %s743 = scalar_lea.sflag [#allocation3], %s742
          %s744 = sand.u32 %s94, 1
          %s745 = smul.addr %s744, 8
          %s746 = scalar_lea.vmem [#allocation2], %s745
          %747 = dma.done %s743, 128
        $region44: #{tpu_custom_call.1} parent=39 // pred_fallthru
          _
      $region40: #{tpu_custom_call.1} parent=5 // pred_fallthru
        _
    $region6: #{tpu_custom_call.1} parent=1 // loop_footer
      %s16 = sadd.s32 1, %s12
    $region7: #{tpu_custom_call.1} parent=1 // loop_footer_branch
      %11 = sbr.rel target = $region3
    $region8: #{tpu_custom_call.1} parent=1 // loop_exit
      _
    %748 = vsyncpa [#allocation3], 1
    %s749 = scalar_lea.sflag [#allocation3], 1
    %750 = vsyncpa %s749, 1

</llo_original>
